<compile_context>
chip_gen: v7x
topology: tpu7x:2x2x1
jax: 0.10.0
libtpu: 0.0.40
codegen_flags: <defaults>
</compile_context>

<pallas_src>
import functools

import jax
import jax.numpy as jnp
from jax import lax
from jax.experimental import pallas as pl
from jax.experimental.pallas import tpu as pltpu


def _round_up(x, m):
    return (x + m - 1) // m * m


def _largest_divisor_leq(n, cap):
    """Largest divisor of n that is <= cap (n, cap >= 1)."""
    d = max(1, min(n, cap))
    while n % d:
        d -= 1
    return d


# -----------------------------------------------------------------------------
# Kernel 1: GRU recurrence, T timesteps per grid step, hoisted input-gate GEMM.
# -----------------------------------------------------------------------------
def _gru_kernel(seq_len,
                embs_ref,           # (T, BM, E)   bf16 embeddings for this time block
                w_i_ref, w_h_ref,   # (E, 3H), (H, 3H) bf16 fused gate weights (r|z|n)
                b_i_ref,            # (1, 3H) f32: [b_ir+b_hr | b_iz+b_hz | b_in]
                b_hn_ref,           # (1, H)  f32: b_hn (kept separate per GRU spec)
                h0_ref,             # (BM, H) f32 initial hidden
                hs_ref,             # out: (T, BM, H) bf16 per-step hidden states
                hfin_ref,           # out: (BM, H) f32 final hidden (the carry)
                gi_ref):            # scratch: (T, BM, 3H) f32 hoisted input gates
    T, BM, E = embs_ref.shape
    H = h0_ref.shape[1]
    t_blk = pl.program_id(1)

    @pl.when(t_blk == 0)
    def _():
        hfin_ref[...] = h0_ref[...]

    # --- hoisted, non-recurrent input-gate GEMM: one big matmul per grid step ---
    x_flat = embs_ref[...].reshape(T * BM, E)                 # tile relabel (BM % 16 == 0)
    gi = jnp.dot(x_flat, w_i_ref[...],
                 preferred_element_type=jnp.float32) + b_i_ref[...]   # (T*BM, 3H) f32
    gi_ref[...] = gi.reshape(T, BM, 3 * H)

    w_h = w_h_ref[...]
    b_hn = jnp.broadcast_to(b_hn_ref[...], (BM, H))           # hoisted broadcast
    t0 = t_blk * T

    def step(ti, h):
        gi_t = gi_ref[ti]                                     # (BM, 3H) f32
        gh = jnp.dot(h.astype(w_h.dtype), w_h,
                     preferred_element_type=jnp.float32)      # (BM, 3H) f32 (serial chain)
        r = jax.nn.sigmoid(gi_t[:, 0 * H:1 * H] + gh[:, 0 * H:1 * H])
        z = jax.nn.sigmoid(gi_t[:, 1 * H:2 * H] + gh[:, 1 * H:2 * H])
        n = jnp.tanh(gi_t[:, 2 * H:3 * H] + r * (gh[:, 2 * H:3 * H] + b_hn))
        h_new = n + z * (h - n)                               # == (1 - z) * n + z * h
        hs_ref[ti] = h_new.astype(hs_ref.dtype)
        # Mask padded timesteps so the carried / final hidden matches seq length.
        return jnp.where(t0 + ti < seq_len, h_new, h)

    unroll = 8 if T % 8 == 0 else (4 if T % 4 == 0 else True)
    hfin_ref[...] = lax.fori_loop(0, T, step, hfin_ref[...], unroll=unroll)


# -----------------------------------------------------------------------------
# Kernel 2: hoisted vocab projection (fully parallel tiled GEMM + bias).
# -----------------------------------------------------------------------------
def _proj_kernel(hs_ref, w_ref, b_ref, out_ref):
    acc = jnp.dot(hs_ref[...], w_ref[...], preferred_element_type=jnp.float32)
    out_ref[...] = (acc + b_ref[...]).astype(out_ref.dtype)


def vqa_decoder_forward(word_seqs, params, hidden=None, *,
                        time_block=32, batch_block=128,
                        logits_dtype=jnp.float32):
    """Eval-mode forward of VQADecoder.

    word_seqs: int32 (M, K)
    returns:  output (M, K, V) `logits_dtype`, hidden (1, M, H) float32
    """
    emb_table = params["embedding"]                   # (V, E)
    w_ih, w_hh = params["w_ih"], params["w_hh"]       # (3H, E), (3H, H)
    b_ih, b_hh = params["b_ih"], params["b_hh"]       # (3H,), (3H,)
    w_out, b_out = params["w_out"], params["b_out"]   # (V, H), (V,)

    M, K = word_seqs.shape
    V, E = emb_table.shape
    H = w_hh.shape[1]
    cd = jnp.bfloat16        # matmul-operand dtype; accumulation & gate math in f32

    # ---- tiling (BM multiple of 16 => layout-clean bf16 leading-dim collapses) ----
    BM = min(_round_up(M, 16), max(16, batch_block))
    M_pad = _round_up(M, BM)
    T = min(max(1, time_block), K)               # timesteps per grid step
    K_pad = _round_up(K, T)

    # ---- glue (plain JAX): time-major gather + fused-gate weight/bias re-layout ----
    ids_t = jnp.pad(jnp.transpose(word_seqs), ((0, K_pad - K), (0, M_pad - M)))
    embs_t = jnp.take(emb_table, ids_t, axis=0).astype(cd)        # (K_pad, M_pad, E)

    w_i = jnp.transpose(w_ih).astype(cd)                          # (E, 3H)  r|z|n
    w_h = jnp.transpose(w_hh).astype(cd)                          # (H, 3H)
    b_i32 = b_ih.astype(jnp.float32)
    b_h32 = b_hh.astype(jnp.float32)
    # r/z input+hidden biases merged into the hoisted GEMM; b_hn separate (GRU spec:
    # n = tanh(x W_in + b_in + r * (h W_hn + b_hn))).
    b_fused = jnp.concatenate(
        [b_i32[:2 * H] + b_h32[:2 * H], b_i32[2 * H:]]).reshape(1, 3 * H)
    b_hn = b_h32[2 * H:].reshape(1, H)

    if hidden is None:
        h0 = jnp.zeros((M_pad, H), jnp.float32)
    else:
        h0 = jnp.asarray(hidden, jnp.float32).reshape(M, H)
        h0 = jnp.pad(h0, ((0, M_pad - M), (0, 0)))

    grid = (M_pad // BM, K_pad // T)

    gru_cost = pl.CostEstimate(
        flops=2 * K_pad * M_pad * 3 * H * (E + H) + 12 * K_pad * M_pad * H,
        transcendentals=3 * K_pad * M_pad * H,
        bytes_accessed=(K_pad * M_pad * E * 2            # embeddings (bf16)
                        + (E + H) * 3 * H * 2            # fused weights (bf16)
                        + (3 * H + H) * 4                # biases
                        + M_pad * H * 4                  # h0
                        + K_pad * M_pad * H * 2          # hidden states out (bf16)
                        + M_pad * H * 4),                # final hidden out
    )

    hs_t, h_fin = pl.pallas_call(
        functools.partial(_gru_kernel, K),
        grid_spec=pltpu.PrefetchScalarGridSpec(
            num_scalar_prefetch=0,
            grid=grid,
            in_specs=[
                pl.BlockSpec((T, BM, E), lambda m, t: (t, m, 0)),     # embeddings
                pl.BlockSpec((E, 3 * H), lambda m, t: (0, 0)),        # fused W_ih^T
                pl.BlockSpec((H, 3 * H), lambda m, t: (0, 0)),        # fused W_hh^T
                pl.BlockSpec((1, 3 * H), lambda m, t: (0, 0)),        # merged r|z|n bias
                pl.BlockSpec((1, H), lambda m, t: (0, 0)),            # b_hn
                pl.BlockSpec((BM, H), lambda m, t: (m, 0)),           # h0
            ],
            out_specs=[
                pl.BlockSpec((T, BM, H), lambda m, t: (t, m, 0)),     # hidden states
                pl.BlockSpec((BM, H), lambda m, t: (m, 0)),           # final hidden
            ],
            scratch_shapes=[pltpu.VMEM((T, BM, 3 * H), jnp.float32)],  # hoisted gi
        ),
        out_shape=(
            jax.ShapeDtypeStruct((K_pad, M_pad, H), cd),
            jax.ShapeDtypeStruct((M_pad, H), jnp.float32),
        ),
        input_output_aliases={5: 1},    # reuse the h0 HBM buffer for the final hidden
        compiler_params=pltpu.CompilerParams(
            dimension_semantics=("parallel", "arbitrary")),
        cost_estimate=gru_cost,
    )(embs_t, w_i, w_h, b_fused, b_hn, h0)

    # ---- hoisted output Linear: one big parallel GEMM over all (batch, time) rows.
    # Small bf16 batch-major re-layout of hs (<1% of the logits stream) done in XLA.
    hs_bm = jnp.transpose(hs_t, (1, 0, 2)).reshape(M_pad * K_pad, H)           # (R, H)

    R = M_pad * K_pad
    # Fat row blocks: BR = BM * (divisor of T) -> always >= BM rows, <= 1024, and it
    # divides R exactly (no degenerate 8-row tiles, no padded rows needed).
    BR = BM * _largest_divisor_leq(T, max(1, 1024 // BM))
    V_pad0 = _round_up(V, 128)
    BV = min(512, V_pad0)                       # lane-dense vocab tile
    V_pad = _round_up(V, BV)

    w_o = jnp.pad(jnp.transpose(w_out).astype(cd), ((0, 0), (0, V_pad - V)))   # (H, V_pad)
    b_o = jnp.pad(b_out.astype(jnp.float32), (0, V_pad - V)).reshape(1, V_pad)

    out_bytes = jnp.dtype(logits_dtype).itemsize
    proj_cost = pl.CostEstimate(
        flops=2 * R * H * V_pad,
        transcendentals=0,
        bytes_accessed=R * H * 2 + H * V_pad * 2 + V_pad * 4 + R * V_pad * out_bytes,
    )

    logits = pl.pallas_call(
        _proj_kernel,
        grid_spec=pltpu.PrefetchScalarGridSpec(
            num_scalar_prefetch=0,
            grid=(R // BR, V_pad // BV),
            in_specs=[
                pl.BlockSpec((BR, H), lambda i, j: (i, 0)),   # rows resident across j
                pl.BlockSpec((H, BV), lambda i, j: (0, j)),   # weights stream (inner j)
                pl.BlockSpec((1, BV), lambda i, j: (0, j)),
            ],
            out_specs=pl.BlockSpec((BR, BV), lambda i, j: (i, j)),
        ),
        out_shape=jax.ShapeDtypeStruct((R, V_pad), logits_dtype),
        compiler_params=pltpu.CompilerParams(
            dimension_semantics=("parallel", "parallel")),
        cost_estimate=proj_cost,
    )(hs_bm, w_o, b_o)

    output = logits.reshape(M_pad, K_pad, V_pad)[:M, :K, :V]    # (M, K, V) batch-first
    return output, h_fin[:M][None, :, :]                        # hidden: (1, M, H)


# -----------------------------------------------------------------------------
# Pure-JAX references for validation.
# -----------------------------------------------------------------------------
def _reference_forward(word_seqs, params, hidden=None, compute_dtype=jnp.bfloat16):
    """lax.scan GRU reference. compute_dtype mirrors the kernel's matmul-operand
    dtype (bf16) for a tight check; pass float32 for the exact PyTorch-spec math."""
    emb_table = params["embedding"]
    w_ih, w_hh = params["w_ih"], params["w_hh"]
    b_ih, b_hh = params["b_ih"], params["b_hh"]
    w_out, b_out = params["w_out"], params["b_out"]
    H = w_hh.shape[1]
    M, K = word_seqs.shape
    cd = compute_dtype

    embs = jnp.take(emb_table, word_seqs, axis=0).astype(cd)     # (M, K, E)
    w_i = jnp.transpose(w_ih).astype(cd)                         # (E, 3H)
    w_h = jnp.transpose(w_hh).astype(cd)                         # (H, 3H)
    b_i = b_ih.astype(jnp.float32)
    b_h = b_hh.astype(jnp.float32)
    h0 = (jnp.zeros((M, H), jnp.float32) if hidden is None
          else jnp.asarray(hidden, jnp.float32).reshape(M, H))

    def cell(h, x):
        gi = jnp.dot(x, w_i, preferred_element_type=jnp.float32) + b_i
        gh = jnp.dot(h.astype(cd), w_h, preferred_element_type=jnp.float32) + b_h
        r = jax.nn.sigmoid(gi[:, :H] + gh[:, :H])
        z = jax.nn.sigmoid(gi[:, H:2 * H] + gh[:, H:2 * H])
        n = jnp.tanh(gi[:, 2 * H:] + r * gh[:, 2 * H:])
        h_new = (1.0 - z) * n + z * h
        return h_new, h_new

    h_fin, hs = lax.scan(cell, h0, jnp.transpose(embs, (1, 0, 2)))   # hs: (K, M, H) f32
    hs_bm = jnp.transpose(hs, (1, 0, 2)).astype(cd).reshape(M * K, H)
    w_o = jnp.transpose(w_out).astype(cd)                            # (H, V)
    out = (jnp.dot(hs_bm, w_o, preferred_element_type=jnp.float32)
           .reshape(M, K, -1) + b_out.astype(jnp.float32))
    return out, h_fin[None]


def _init_params(key, vocab_size, embed_dim, hidden_dim):
    ks = jax.random.split(key, 7)
    s = 0.1
    return {
        "embedding": s * jax.random.normal(ks[0], (vocab_size, embed_dim), jnp.float32),
        "w_ih":      s * jax.random.normal(ks[1], (3 * hidden_dim, embed_dim), jnp.float32),
        "w_hh":      s * jax.random.normal(ks[2], (3 * hidden_dim, hidden_dim), jnp.float32),
        "b_ih":      s * jax.random.normal(ks[3], (3 * hidden_dim,), jnp.float32),
        "b_hh":      s * jax.random.normal(ks[4], (3 * hidden_dim,), jnp.float32),
        "w_out":     s * jax.random.normal(ks[5], (vocab_size, hidden_dim), jnp.float32),
        "b_out":     s * jax.random.normal(ks[6], (vocab_size,), jnp.float32),
    }


if __name__ == "__main__":
    vocab_size, embed_dim, hidden_dim = 50, 32, 128
    M, K = 4, 9   # batch, max sequence length (K deliberately not a multiple of 8)

    key = jax.random.PRNGKey(0)
    pkey, wkey, hkey = jax.random.split(key, 3)
    params = _init_params(pkey, vocab_size, embed_dim, hidden_dim)
    word_seqs = jax.random.randint(wkey, (M, K), 0, vocab_size, dtype=jnp.int32)

    # --- eval-mode forward, hidden=None ---
    out, hid = vqa_decoder_forward(word_seqs, params, hidden=None)
    out, hid = jax.block_until_ready(out), jax.block_until_ready(hid)
    assert out.shape == (M, K, vocab_size), out.shape
    assert hid.shape == (1, M, hidden_dim), hid.shape

    # tight check against a reference using the same bf16 matmul operands
    ref_out, ref_hid = _reference_forward(word_seqs, params, hidden=None)
    err_o = float(jnp.max(jnp.abs(out - ref_out)))
    err_h = float(jnp.max(jnp.abs(hid - ref_hid)))
    assert err_o < 2e-3 and err_h < 2e-3, (err_o, err_h)

    # loose sanity check against the pure-f32 spec math (bounds bf16 truncation)
    ref_out32, ref_hid32 = _reference_forward(word_seqs, params, hidden=None,
                                              compute_dtype=jnp.float32)
    assert float(jnp.max(jnp.abs(out - ref_out32))) < 2e-2
    assert float(jnp.max(jnp.abs(hid - ref_hid32))) < 2e-2

    # --- eval-mode forward with a provided initial hidden state ---
    hidden0 = 0.1 * jax.random.normal(hkey, (1, M, hidden_dim), jnp.float32)
    out2, hid2 = vqa_decoder_forward(word_seqs, params, hidden=hidden0)
    out2, hid2 = jax.block_until_ready(out2), jax.block_until_ready(hid2)
    ref_out2, ref_hid2 = _reference_forward(word_seqs, params, hidden=hidden0)
    assert float(jnp.max(jnp.abs(out2 - ref_out2))) < 2e-3
    assert float(jnp.max(jnp.abs(hid2 - ref_hid2))) < 2e-3

    # --- bf16-logits variant (halves the dominant output-write stream) ---
    out3, hid3 = vqa_decoder_forward(word_seqs, params, hidden=None,
                                     logits_dtype=jnp.bfloat16)
    out3, hid3 = jax.block_until_ready(out3), jax.block_until_ready(hid3)
    assert out3.dtype == jnp.bfloat16
    assert float(jnp.max(jnp.abs(out3.astype(jnp.float32) - ref_out))) < 1e-2
    assert float(jnp.max(jnp.abs(hid3 - ref_hid))) < 2e-3

    print("KERNEL_OK")
</pallas_src>

<mosaic_0001>
module attributes {stable_mosaic.version = 11 : i64} {
  func.func @_gru_kernel(%arg0: i32, %arg1: i32, %arg2: memref<9x16x32xbf16, #tpu.memory_space<vmem>>, %arg3: memref<32x384xbf16, #tpu.memory_space<vmem>>, %arg4: memref<128x384xbf16, #tpu.memory_space<vmem>>, %arg5: memref<1x384xf32, #tpu.memory_space<vmem>>, %arg6: memref<1x128xf32, #tpu.memory_space<vmem>>, %arg7: memref<16x128xf32, #tpu.memory_space<vmem>>, %arg8: memref<9x16x128xbf16, #tpu.memory_space<vmem>>, %arg9: memref<16x128xf32, #tpu.memory_space<vmem>>, %arg10: memref<9x16x384xf32, #tpu.memory_space<vmem>>) attributes {dimension_semantics = [#tpu.dimension_semantics<parallel>, #tpu.dimension_semantics<arbitrary>], iteration_bounds = array<i64: 1, 1>, scalar_prefetch = 0 : i64, scratch_operands = 1 : i64, tpu.core_type = #tpu.core_type<tc>, window_params = [{transform_indices = @transform_0, window_bounds = array<i64: 9, 16, 32>}, {pipeline_mode = #tpu.pipeline_mode<synchronous>, transform_indices = @transform_1, window_bounds = array<i64: 32, 384>}, {pipeline_mode = #tpu.pipeline_mode<synchronous>, transform_indices = @transform_2, window_bounds = array<i64: 128, 384>}, {pipeline_mode = #tpu.pipeline_mode<synchronous>, transform_indices = @transform_3, window_bounds = array<i64: 1, 384>}, {pipeline_mode = #tpu.pipeline_mode<synchronous>, transform_indices = @transform_4, window_bounds = array<i64: 1, 128>}, {transform_indices = @transform_5, window_bounds = array<i64: 16, 128>}, {transform_indices = @transform_6, window_bounds = array<i64: 9, 16, 128>}, {transform_indices = @transform_7, window_bounds = array<i64: 16, 128>}]} {
    %c0_i32 = arith.constant 0 : i32
    %0 = arith.cmpi eq, %arg1, %c0_i32 : i32
    %1 = arith.extui %0 : i1 to i32
    %c0_i32_0 = arith.constant 0 : i32
    %2 = arith.cmpi ne, %1, %c0_i32_0 : i32
    scf.if %2 {
      %c0_92 = arith.constant 0 : index
      %c0_93 = arith.constant 0 : index
      %361 = vector.load %arg7[%c0_92, %c0_93] : memref<16x128xf32, #tpu.memory_space<vmem>>, vector<16x128xf32>
      %c0_94 = arith.constant 0 : index
      %c0_95 = arith.constant 0 : index
      %362 = vector.load %arg9[%c0_94, %c0_95] : memref<16x128xf32, #tpu.memory_space<vmem>>, vector<16x128xf32>
      tpu.vector_store %arg9[%c0_94, %c0_95], %361 {strides = array<i32>} : memref<16x128xf32, #tpu.memory_space<vmem>>, vector<16x128xf32>,
    } else {
    }
    %c0 = arith.constant 0 : index
    %c0_1 = arith.constant 0 : index
    %c0_2 = arith.constant 0 : index
    %3 = vector.load %arg2[%c0, %c0_1, %c0_2] : memref<9x16x32xbf16, #tpu.memory_space<vmem>>, vector<9x16x32xbf16>
    %4 = vector.shape_cast %3 : vector<9x16x32xbf16> to vector<144x32xbf16>
    %c0_3 = arith.constant 0 : index
    %c0_4 = arith.constant 0 : index
    %5 = vector.load %arg3[%c0_3, %c0_4] : memref<32x384xbf16, #tpu.memory_space<vmem>>, vector<32x384xbf16>
    %cst = arith.constant dense<0.000000e+00> : vector<144x384xf32>
    %6 = tpu.matmul %4, %5, %cst {dimension_numbers = #tpu.dot_dimension_numbers<[1], [0], [0], [1], [0, 0, 1, 1], [], []>} : vector<144x32xbf16>, vector<32x384xbf16>, vector<144x384xf32> -> vector<144x384xf32>
    %c0_5 = arith.constant 0 : index
    %c0_6 = arith.constant 0 : index
    %7 = vector.load %arg5[%c0_5, %c0_6] : memref<1x384xf32, #tpu.memory_space<vmem>>, vector<1x384xf32>
    %8 = vector.broadcast %7 : vector<1x384xf32> to vector<144x384xf32>
    %9 = arith.addf %6, %8 : vector<144x384xf32>
    %10 = vector.shape_cast %9 : vector<144x384xf32> to vector<9x16x384xf32>
    %c0_7 = arith.constant 0 : index
    %c0_8 = arith.constant 0 : index
    %c0_9 = arith.constant 0 : index
    %11 = vector.load %arg10[%c0_7, %c0_8, %c0_9] : memref<9x16x384xf32, #tpu.memory_space<vmem>>, vector<9x16x384xf32>
    tpu.vector_store %arg10[%c0_7, %c0_8, %c0_9], %10 {strides = array<i32>} : memref<9x16x384xf32, #tpu.memory_space<vmem>>, vector<9x16x384xf32>,
    %c0_10 = arith.constant 0 : index
    %c0_11 = arith.constant 0 : index
    %12 = vector.load %arg4[%c0_10, %c0_11] : memref<128x384xbf16, #tpu.memory_space<vmem>>, vector<128x384xbf16>
    %c0_12 = arith.constant 0 : index
    %c0_13 = arith.constant 0 : index
    %13 = vector.load %arg6[%c0_12, %c0_13] : memref<1x128xf32, #tpu.memory_space<vmem>>, vector<1x128xf32>
    %14 = vector.shape_cast %13 : vector<1x128xf32> to vector<1x128xf32>
    %15 = vector.broadcast %14 : vector<1x128xf32> to vector<16x128xf32>
    %c9_i32 = arith.constant 9 : i32
    %16 = arith.muli %arg1, %c9_i32 : i32
    %c0_14 = arith.constant 0 : index
    %c0_15 = arith.constant 0 : index
    %17 = vector.load %arg9[%c0_14, %c0_15] : memref<16x128xf32, #tpu.memory_space<vmem>>, vector<16x128xf32>
    %c0_i32_16 = arith.constant 0 : i32
    %18 = arith.index_cast %c0_i32_16 : i32 to index
    %c0_17 = arith.constant 0 : index
    %c0_18 = arith.constant 0 : index
    %19 = vector.load %arg10[%18, %c0_17, %c0_18] : memref<9x16x384xf32, #tpu.memory_space<vmem>>, vector<1x16x384xf32>
    %20 = vector.shape_cast %19 : vector<1x16x384xf32> to vector<16x384xf32>
    %21 = arith.truncf %17 : vector<16x128xf32> to vector<16x128xbf16>
    %cst_19 = arith.constant dense<0.000000e+00> : vector<16x384xf32>
    %22 = tpu.matmul %21, %12, %cst_19 {dimension_numbers = #tpu.dot_dimension_numbers<[1], [0], [0], [1], [0, 0, 1, 1], [], []>} : vector<16x128xbf16>, vector<128x384xbf16>, vector<16x384xf32> -> vector<16x384xf32>
    %23 = vector.extract_strided_slice %20 {offsets = [0, 0], sizes = [16, 128], strides = [1, 1]} : vector<16x384xf32> to vector<16x128xf32>
    %24 = vector.extract_strided_slice %22 {offsets = [0, 0], sizes = [16, 128], strides = [1, 1]} : vector<16x384xf32> to vector<16x128xf32>
    %25 = arith.addf %23, %24 : vector<16x128xf32>
    %26 = arith.negf %25 : vector<16x128xf32>
    %27 = math.exp %26 : vector<16x128xf32>
    %cst_20 = arith.constant 1.000000e+00 : f32
    %28 = vector.broadcast %cst_20 : f32 to vector<16x128xf32>
    %29 = arith.addf %28, %27 : vector<16x128xf32>
    %30 = arith.divf %28, %29 : vector<16x128xf32>
    %31 = vector.extract_strided_slice %20 {offsets = [0, 128], sizes = [16, 128], strides = [1, 1]} : vector<16x384xf32> to vector<16x128xf32>
    %32 = vector.extract_strided_slice %22 {offsets = [0, 128], sizes = [16, 128], strides = [1, 1]} : vector<16x384xf32> to vector<16x128xf32>
    %33 = arith.addf %31, %32 : vector<16x128xf32>
    %34 = arith.negf %33 : vector<16x128xf32>
    %35 = math.exp %34 : vector<16x128xf32>
    %cst_21 = arith.constant 1.000000e+00 : f32
    %36 = vector.broadcast %cst_21 : f32 to vector<16x128xf32>
    %37 = arith.addf %36, %35 : vector<16x128xf32>
    %38 = arith.divf %36, %37 : vector<16x128xf32>
    %39 = vector.extract_strided_slice %20 {offsets = [0, 256], sizes = [16, 128], strides = [1, 1]} : vector<16x384xf32> to vector<16x128xf32>
    %40 = vector.extract_strided_slice %22 {offsets = [0, 256], sizes = [16, 128], strides = [1, 1]} : vector<16x384xf32> to vector<16x128xf32>
    %41 = arith.addf %40, %15 : vector<16x128xf32>
    %42 = arith.mulf %30, %41 : vector<16x128xf32>
    %43 = arith.addf %39, %42 : vector<16x128xf32>
    %44 = math.tanh %43 : vector<16x128xf32>
    %45 = arith.subf %17, %44 : vector<16x128xf32>
    %46 = arith.mulf %38, %45 : vector<16x128xf32>
    %47 = arith.addf %44, %46 : vector<16x128xf32>
    %48 = arith.truncf %47 : vector<16x128xf32> to vector<16x128xbf16>
    %49 = arith.index_cast %c0_i32_16 : i32 to index
    %c0_22 = arith.constant 0 : index
    %c0_23 = arith.constant 0 : index
    %50 = vector.load %arg8[%49, %c0_22, %c0_23] : memref<9x16x128xbf16, #tpu.memory_space<vmem>>, vector<1x16x128xbf16>
    %51 = vector.shape_cast %50 : vector<1x16x128xbf16> to vector<16x128xbf16>
    %52 = vector.shape_cast %48 : vector<16x128xbf16> to vector<1x16x128xbf16>
    tpu.vector_store %arg8[%49, %c0_22, %c0_23], %52 {strides = array<i32>} : memref<9x16x128xbf16, #tpu.memory_space<vmem>>, vector<1x16x128xbf16>,
    %53 = arith.addi %16, %c0_i32_16 : i32
    %c9_i32_24 = arith.constant 9 : i32
    %54 = arith.cmpi slt, %53, %c9_i32_24 : i32
    %55 = arith.select %54, %47, %17 : vector<16x128xf32>
    %c1_i32 = arith.constant 1 : i32
    %56 = arith.index_cast %c1_i32 : i32 to index
    %c0_25 = arith.constant 0 : index
    %c0_26 = arith.constant 0 : index
    %57 = vector.load %arg10[%56, %c0_25, %c0_26] : memref<9x16x384xf32, #tpu.memory_space<vmem>>, vector<1x16x384xf32>
    %58 = vector.shape_cast %57 : vector<1x16x384xf32> to vector<16x384xf32>
    %59 = arith.truncf %55 : vector<16x128xf32> to vector<16x128xbf16>
    %cst_27 = arith.constant dense<0.000000e+00> : vector<16x384xf32>
    %60 = tpu.matmul %59, %12, %cst_27 {dimension_numbers = #tpu.dot_dimension_numbers<[1], [0], [0], [1], [0, 0, 1, 1], [], []>} : vector<16x128xbf16>, vector<128x384xbf16>, vector<16x384xf32> -> vector<16x384xf32>
    %61 = vector.extract_strided_slice %58 {offsets = [0, 0], sizes = [16, 128], strides = [1, 1]} : vector<16x384xf32> to vector<16x128xf32>
    %62 = vector.extract_strided_slice %60 {offsets = [0, 0], sizes = [16, 128], strides = [1, 1]} : vector<16x384xf32> to vector<16x128xf32>
    %63 = arith.addf %61, %62 : vector<16x128xf32>
    %64 = arith.negf %63 : vector<16x128xf32>
    %65 = math.exp %64 : vector<16x128xf32>
    %cst_28 = arith.constant 1.000000e+00 : f32
    %66 = vector.broadcast %cst_28 : f32 to vector<16x128xf32>
    %67 = arith.addf %66, %65 : vector<16x128xf32>
    %68 = arith.divf %66, %67 : vector<16x128xf32>
    %69 = vector.extract_strided_slice %58 {offsets = [0, 128], sizes = [16, 128], strides = [1, 1]} : vector<16x384xf32> to vector<16x128xf32>
    %70 = vector.extract_strided_slice %60 {offsets = [0, 128], sizes = [16, 128], strides = [1, 1]} : vector<16x384xf32> to vector<16x128xf32>
    %71 = arith.addf %69, %70 : vector<16x128xf32>
    %72 = arith.negf %71 : vector<16x128xf32>
    %73 = math.exp %72 : vector<16x128xf32>
    %cst_29 = arith.constant 1.000000e+00 : f32
    %74 = vector.broadcast %cst_29 : f32 to vector<16x128xf32>
    %75 = arith.addf %74, %73 : vector<16x128xf32>
    %76 = arith.divf %74, %75 : vector<16x128xf32>
    %77 = vector.extract_strided_slice %58 {offsets = [0, 256], sizes = [16, 128], strides = [1, 1]} : vector<16x384xf32> to vector<16x128xf32>
    %78 = vector.extract_strided_slice %60 {offsets = [0, 256], sizes = [16, 128], strides = [1, 1]} : vector<16x384xf32> to vector<16x128xf32>
    %79 = arith.addf %78, %15 : vector<16x128xf32>
    %80 = arith.mulf %68, %79 : vector<16x128xf32>
    %81 = arith.addf %77, %80 : vector<16x128xf32>
    %82 = math.tanh %81 : vector<16x128xf32>
    %83 = arith.subf %55, %82 : vector<16x128xf32>
    %84 = arith.mulf %76, %83 : vector<16x128xf32>
    %85 = arith.addf %82, %84 : vector<16x128xf32>
    %86 = arith.truncf %85 : vector<16x128xf32> to vector<16x128xbf16>
    %87 = arith.index_cast %c1_i32 : i32 to index
    %c0_30 = arith.constant 0 : index
    %c0_31 = arith.constant 0 : index
    %88 = vector.load %arg8[%87, %c0_30, %c0_31] : memref<9x16x128xbf16, #tpu.memory_space<vmem>>, vector<1x16x128xbf16>
    %89 = vector.shape_cast %88 : vector<1x16x128xbf16> to vector<16x128xbf16>
    %90 = vector.shape_cast %86 : vector<16x128xbf16> to vector<1x16x128xbf16>
    tpu.vector_store %arg8[%87, %c0_30, %c0_31], %90 {strides = array<i32>} : memref<9x16x128xbf16, #tpu.memory_space<vmem>>, vector<1x16x128xbf16>,
    %91 = arith.addi %16, %c1_i32 : i32
    %c9_i32_32 = arith.constant 9 : i32
    %92 = arith.cmpi slt, %91, %c9_i32_32 : i32
    %93 = arith.select %92, %85, %55 : vector<16x128xf32>
    %c2_i32 = arith.constant 2 : i32
    %94 = arith.index_cast %c2_i32 : i32 to index
    %c0_33 = arith.constant 0 : index
    %c0_34 = arith.constant 0 : index
    %95 = vector.load %arg10[%94, %c0_33, %c0_34] : memref<9x16x384xf32, #tpu.memory_space<vmem>>, vector<1x16x384xf32>
    %96 = vector.shape_cast %95 : vector<1x16x384xf32> to vector<16x384xf32>
    %97 = arith.truncf %93 : vector<16x128xf32> to vector<16x128xbf16>
    %cst_35 = arith.constant dense<0.000000e+00> : vector<16x384xf32>
    %98 = tpu.matmul %97, %12, %cst_35 {dimension_numbers = #tpu.dot_dimension_numbers<[1], [0], [0], [1], [0, 0, 1, 1], [], []>} : vector<16x128xbf16>, vector<128x384xbf16>, vector<16x384xf32> -> vector<16x384xf32>
    %99 = vector.extract_strided_slice %96 {offsets = [0, 0], sizes = [16, 128], strides = [1, 1]} : vector<16x384xf32> to vector<16x128xf32>
    %100 = vector.extract_strided_slice %98 {offsets = [0, 0], sizes = [16, 128], strides = [1, 1]} : vector<16x384xf32> to vector<16x128xf32>
    %101 = arith.addf %99, %100 : vector<16x128xf32>
    %102 = arith.negf %101 : vector<16x128xf32>
    %103 = math.exp %102 : vector<16x128xf32>
    %cst_36 = arith.constant 1.000000e+00 : f32
    %104 = vector.broadcast %cst_36 : f32 to vector<16x128xf32>
    %105 = arith.addf %104, %103 : vector<16x128xf32>
    %106 = arith.divf %104, %105 : vector<16x128xf32>
    %107 = vector.extract_strided_slice %96 {offsets = [0, 128], sizes = [16, 128], strides = [1, 1]} : vector<16x384xf32> to vector<16x128xf32>
    %108 = vector.extract_strided_slice %98 {offsets = [0, 128], sizes = [16, 128], strides = [1, 1]} : vector<16x384xf32> to vector<16x128xf32>
    %109 = arith.addf %107, %108 : vector<16x128xf32>
    %110 = arith.negf %109 : vector<16x128xf32>
    %111 = math.exp %110 : vector<16x128xf32>
    %cst_37 = arith.constant 1.000000e+00 : f32
    %112 = vector.broadcast %cst_37 : f32 to vector<16x128xf32>
    %113 = arith.addf %112, %111 : vector<16x128xf32>
    %114 = arith.divf %112, %113 : vector<16x128xf32>
    %115 = vector.extract_strided_slice %96 {offsets = [0, 256], sizes = [16, 128], strides = [1, 1]} : vector<16x384xf32> to vector<16x128xf32>
    %116 = vector.extract_strided_slice %98 {offsets = [0, 256], sizes = [16, 128], strides = [1, 1]} : vector<16x384xf32> to vector<16x128xf32>
    %117 = arith.addf %116, %15 : vector<16x128xf32>
    %118 = arith.mulf %106, %117 : vector<16x128xf32>
    %119 = arith.addf %115, %118 : vector<16x128xf32>
    %120 = math.tanh %119 : vector<16x128xf32>
    %121 = arith.subf %93, %120 : vector<16x128xf32>
    %122 = arith.mulf %114, %121 : vector<16x128xf32>
    %123 = arith.addf %120, %122 : vector<16x128xf32>
    %124 = arith.truncf %123 : vector<16x128xf32> to vector<16x128xbf16>
    %125 = arith.index_cast %c2_i32 : i32 to index
    %c0_38 = arith.constant 0 : index
    %c0_39 = arith.constant 0 : index
    %126 = vector.load %arg8[%125, %c0_38, %c0_39] : memref<9x16x128xbf16, #tpu.memory_space<vmem>>, vector<1x16x128xbf16>
    %127 = vector.shape_cast %126 : vector<1x16x128xbf16> to vector<16x128xbf16>
    %128 = vector.shape_cast %124 : vector<16x128xbf16> to vector<1x16x128xbf16>
    tpu.vector_store %arg8[%125, %c0_38, %c0_39], %128 {strides = array<i32>} : memref<9x16x128xbf16, #tpu.memory_space<vmem>>, vector<1x16x128xbf16>,
    %129 = arith.addi %16, %c2_i32 : i32
    %c9_i32_40 = arith.constant 9 : i32
    %130 = arith.cmpi slt, %129, %c9_i32_40 : i32
    %131 = arith.select %130, %123, %93 : vector<16x128xf32>
    %c3_i32 = arith.constant 3 : i32
    %132 = arith.index_cast %c3_i32 : i32 to index
    %c0_41 = arith.constant 0 : index
    %c0_42 = arith.constant 0 : index
    %133 = vector.load %arg10[%132, %c0_41, %c0_42] : memref<9x16x384xf32, #tpu.memory_space<vmem>>, vector<1x16x384xf32>
    %134 = vector.shape_cast %133 : vector<1x16x384xf32> to vector<16x384xf32>
    %135 = arith.truncf %131 : vector<16x128xf32> to vector<16x128xbf16>
    %cst_43 = arith.constant dense<0.000000e+00> : vector<16x384xf32>
    %136 = tpu.matmul %135, %12, %cst_43 {dimension_numbers = #tpu.dot_dimension_numbers<[1], [0], [0], [1], [0, 0, 1, 1], [], []>} : vector<16x128xbf16>, vector<128x384xbf16>, vector<16x384xf32> -> vector<16x384xf32>
    %137 = vector.extract_strided_slice %134 {offsets = [0, 0], sizes = [16, 128], strides = [1, 1]} : vector<16x384xf32> to vector<16x128xf32>
    %138 = vector.extract_strided_slice %136 {offsets = [0, 0], sizes = [16, 128], strides = [1, 1]} : vector<16x384xf32> to vector<16x128xf32>
    %139 = arith.addf %137, %138 : vector<16x128xf32>
    %140 = arith.negf %139 : vector<16x128xf32>
    %141 = math.exp %140 : vector<16x128xf32>
    %cst_44 = arith.constant 1.000000e+00 : f32
    %142 = vector.broadcast %cst_44 : f32 to vector<16x128xf32>
    %143 = arith.addf %142, %141 : vector<16x128xf32>
    %144 = arith.divf %142, %143 : vector<16x128xf32>
    %145 = vector.extract_strided_slice %134 {offsets = [0, 128], sizes = [16, 128], strides = [1, 1]} : vector<16x384xf32> to vector<16x128xf32>
    %146 = vector.extract_strided_slice %136 {offsets = [0, 128], sizes = [16, 128], strides = [1, 1]} : vector<16x384xf32> to vector<16x128xf32>
    %147 = arith.addf %145, %146 : vector<16x128xf32>
    %148 = arith.negf %147 : vector<16x128xf32>
    %149 = math.exp %148 : vector<16x128xf32>
    %cst_45 = arith.constant 1.000000e+00 : f32
    %150 = vector.broadcast %cst_45 : f32 to vector<16x128xf32>
    %151 = arith.addf %150, %149 : vector<16x128xf32>
    %152 = arith.divf %150, %151 : vector<16x128xf32>
    %153 = vector.extract_strided_slice %134 {offsets = [0, 256], sizes = [16, 128], strides = [1, 1]} : vector<16x384xf32> to vector<16x128xf32>
    %154 = vector.extract_strided_slice %136 {offsets = [0, 256], sizes = [16, 128], strides = [1, 1]} : vector<16x384xf32> to vector<16x128xf32>
    %155 = arith.addf %154, %15 : vector<16x128xf32>
    %156 = arith.mulf %144, %155 : vector<16x128xf32>
    %157 = arith.addf %153, %156 : vector<16x128xf32>
    %158 = math.tanh %157 : vector<16x128xf32>
    %159 = arith.subf %131, %158 : vector<16x128xf32>
    %160 = arith.mulf %152, %159 : vector<16x128xf32>
    %161 = arith.addf %158, %160 : vector<16x128xf32>
    %162 = arith.truncf %161 : vector<16x128xf32> to vector<16x128xbf16>
    %163 = arith.index_cast %c3_i32 : i32 to index
    %c0_46 = arith.constant 0 : index
    %c0_47 = arith.constant 0 : index
    %164 = vector.load %arg8[%163, %c0_46, %c0_47] : memref<9x16x128xbf16, #tpu.memory_space<vmem>>, vector<1x16x128xbf16>
    %165 = vector.shape_cast %164 : vector<1x16x128xbf16> to vector<16x128xbf16>
    %166 = vector.shape_cast %162 : vector<16x128xbf16> to vector<1x16x128xbf16>
    tpu.vector_store %arg8[%163, %c0_46, %c0_47], %166 {strides = array<i32>} : memref<9x16x128xbf16, #tpu.memory_space<vmem>>, vector<1x16x128xbf16>,
    %167 = arith.addi %16, %c3_i32 : i32
    %c9_i32_48 = arith.constant 9 : i32
    %168 = arith.cmpi slt, %167, %c9_i32_48 : i32
    %169 = arith.select %168, %161, %131 : vector<16x128xf32>
    %c4_i32 = arith.constant 4 : i32
    %170 = arith.index_cast %c4_i32 : i32 to index
    %c0_49 = arith.constant 0 : index
    %c0_50 = arith.constant 0 : index
    %171 = vector.load %arg10[%170, %c0_49, %c0_50] : memref<9x16x384xf32, #tpu.memory_space<vmem>>, vector<1x16x384xf32>
    %172 = vector.shape_cast %171 : vector<1x16x384xf32> to vector<16x384xf32>
    %173 = arith.truncf %169 : vector<16x128xf32> to vector<16x128xbf16>
    %cst_51 = arith.constant dense<0.000000e+00> : vector<16x384xf32>
    %174 = tpu.matmul %173, %12, %cst_51 {dimension_numbers = #tpu.dot_dimension_numbers<[1], [0], [0], [1], [0, 0, 1, 1], [], []>} : vector<16x128xbf16>, vector<128x384xbf16>, vector<16x384xf32> -> vector<16x384xf32>
    %175 = vector.extract_strided_slice %172 {offsets = [0, 0], sizes = [16, 128], strides = [1, 1]} : vector<16x384xf32> to vector<16x128xf32>
    %176 = vector.extract_strided_slice %174 {offsets = [0, 0], sizes = [16, 128], strides = [1, 1]} : vector<16x384xf32> to vector<16x128xf32>
    %177 = arith.addf %175, %176 : vector<16x128xf32>
    %178 = arith.negf %177 : vector<16x128xf32>
    %179 = math.exp %178 : vector<16x128xf32>
    %cst_52 = arith.constant 1.000000e+00 : f32
    %180 = vector.broadcast %cst_52 : f32 to vector<16x128xf32>
    %181 = arith.addf %180, %179 : vector<16x128xf32>
    %182 = arith.divf %180, %181 : vector<16x128xf32>
    %183 = vector.extract_strided_slice %172 {offsets = [0, 128], sizes = [16, 128], strides = [1, 1]} : vector<16x384xf32> to vector<16x128xf32>
    %184 = vector.extract_strided_slice %174 {offsets = [0, 128], sizes = [16, 128], strides = [1, 1]} : vector<16x384xf32> to vector<16x128xf32>
    %185 = arith.addf %183, %184 : vector<16x128xf32>
    %186 = arith.negf %185 : vector<16x128xf32>
    %187 = math.exp %186 : vector<16x128xf32>
    %cst_53 = arith.constant 1.000000e+00 : f32
    %188 = vector.broadcast %cst_53 : f32 to vector<16x128xf32>
    %189 = arith.addf %188, %187 : vector<16x128xf32>
    %190 = arith.divf %188, %189 : vector<16x128xf32>
    %191 = vector.extract_strided_slice %172 {offsets = [0, 256], sizes = [16, 128], strides = [1, 1]} : vector<16x384xf32> to vector<16x128xf32>
    %192 = vector.extract_strided_slice %174 {offsets = [0, 256], sizes = [16, 128], strides = [1, 1]} : vector<16x384xf32> to vector<16x128xf32>
    %193 = arith.addf %192, %15 : vector<16x128xf32>
    %194 = arith.mulf %182, %193 : vector<16x128xf32>
    %195 = arith.addf %191, %194 : vector<16x128xf32>
    %196 = math.tanh %195 : vector<16x128xf32>
    %197 = arith.subf %169, %196 : vector<16x128xf32>
    %198 = arith.mulf %190, %197 : vector<16x128xf32>
    %199 = arith.addf %196, %198 : vector<16x128xf32>
    %200 = arith.truncf %199 : vector<16x128xf32> to vector<16x128xbf16>
    %201 = arith.index_cast %c4_i32 : i32 to index
    %c0_54 = arith.constant 0 : index
    %c0_55 = arith.constant 0 : index
    %202 = vector.load %arg8[%201, %c0_54, %c0_55] : memref<9x16x128xbf16, #tpu.memory_space<vmem>>, vector<1x16x128xbf16>
    %203 = vector.shape_cast %202 : vector<1x16x128xbf16> to vector<16x128xbf16>
    %204 = vector.shape_cast %200 : vector<16x128xbf16> to vector<1x16x128xbf16>
    tpu.vector_store %arg8[%201, %c0_54, %c0_55], %204 {strides = array<i32>} : memref<9x16x128xbf16, #tpu.memory_space<vmem>>, vector<1x16x128xbf16>,
    %205 = arith.addi %16, %c4_i32 : i32
    %c9_i32_56 = arith.constant 9 : i32
    %206 = arith.cmpi slt, %205, %c9_i32_56 : i32
    %207 = arith.select %206, %199, %169 : vector<16x128xf32>
    %c5_i32 = arith.constant 5 : i32
    %208 = arith.index_cast %c5_i32 : i32 to index
    %c0_57 = arith.constant 0 : index
    %c0_58 = arith.constant 0 : index
    %209 = vector.load %arg10[%208, %c0_57, %c0_58] : memref<9x16x384xf32, #tpu.memory_space<vmem>>, vector<1x16x384xf32>
    %210 = vector.shape_cast %209 : vector<1x16x384xf32> to vector<16x384xf32>
    %211 = arith.truncf %207 : vector<16x128xf32> to vector<16x128xbf16>
    %cst_59 = arith.constant dense<0.000000e+00> : vector<16x384xf32>
    %212 = tpu.matmul %211, %12, %cst_59 {dimension_numbers = #tpu.dot_dimension_numbers<[1], [0], [0], [1], [0, 0, 1, 1], [], []>} : vector<16x128xbf16>, vector<128x384xbf16>, vector<16x384xf32> -> vector<16x384xf32>
    %213 = vector.extract_strided_slice %210 {offsets = [0, 0], sizes = [16, 128], strides = [1, 1]} : vector<16x384xf32> to vector<16x128xf32>
    %214 = vector.extract_strided_slice %212 {offsets = [0, 0], sizes = [16, 128], strides = [1, 1]} : vector<16x384xf32> to vector<16x128xf32>
    %215 = arith.addf %213, %214 : vector<16x128xf32>
    %216 = arith.negf %215 : vector<16x128xf32>
    %217 = math.exp %216 : vector<16x128xf32>
    %cst_60 = arith.constant 1.000000e+00 : f32
    %218 = vector.broadcast %cst_60 : f32 to vector<16x128xf32>
    %219 = arith.addf %218, %217 : vector<16x128xf32>
    %220 = arith.divf %218, %219 : vector<16x128xf32>
    %221 = vector.extract_strided_slice %210 {offsets = [0, 128], sizes = [16, 128], strides = [1, 1]} : vector<16x384xf32> to vector<16x128xf32>
    %222 = vector.extract_strided_slice %212 {offsets = [0, 128], sizes = [16, 128], strides = [1, 1]} : vector<16x384xf32> to vector<16x128xf32>
    %223 = arith.addf %221, %222 : vector<16x128xf32>
    %224 = arith.negf %223 : vector<16x128xf32>
    %225 = math.exp %224 : vector<16x128xf32>
    %cst_61 = arith.constant 1.000000e+00 : f32
    %226 = vector.broadcast %cst_61 : f32 to vector<16x128xf32>
    %227 = arith.addf %226, %225 : vector<16x128xf32>
    %228 = arith.divf %226, %227 : vector<16x128xf32>
    %229 = vector.extract_strided_slice %210 {offsets = [0, 256], sizes = [16, 128], strides = [1, 1]} : vector<16x384xf32> to vector<16x128xf32>
    %230 = vector.extract_strided_slice %212 {offsets = [0, 256], sizes = [16, 128], strides = [1, 1]} : vector<16x384xf32> to vector<16x128xf32>
    %231 = arith.addf %230, %15 : vector<16x128xf32>
    %232 = arith.mulf %220, %231 : vector<16x128xf32>
    %233 = arith.addf %229, %232 : vector<16x128xf32>
    %234 = math.tanh %233 : vector<16x128xf32>
    %235 = arith.subf %207, %234 : vector<16x128xf32>
    %236 = arith.mulf %228, %235 : vector<16x128xf32>
    %237 = arith.addf %234, %236 : vector<16x128xf32>
    %238 = arith.truncf %237 : vector<16x128xf32> to vector<16x128xbf16>
    %239 = arith.index_cast %c5_i32 : i32 to index
    %c0_62 = arith.constant 0 : index
    %c0_63 = arith.constant 0 : index
    %240 = vector.load %arg8[%239, %c0_62, %c0_63] : memref<9x16x128xbf16, #tpu.memory_space<vmem>>, vector<1x16x128xbf16>
    %241 = vector.shape_cast %240 : vector<1x16x128xbf16> to vector<16x128xbf16>
    %242 = vector.shape_cast %238 : vector<16x128xbf16> to vector<1x16x128xbf16>
    tpu.vector_store %arg8[%239, %c0_62, %c0_63], %242 {strides = array<i32>} : memref<9x16x128xbf16, #tpu.memory_space<vmem>>, vector<1x16x128xbf16>,
    %243 = arith.addi %16, %c5_i32 : i32
    %c9_i32_64 = arith.constant 9 : i32
    %244 = arith.cmpi slt, %243, %c9_i32_64 : i32
    %245 = arith.select %244, %237, %207 : vector<16x128xf32>
    %c6_i32 = arith.constant 6 : i32
    %246 = arith.index_cast %c6_i32 : i32 to index
    %c0_65 = arith.constant 0 : index
    %c0_66 = arith.constant 0 : index
    %247 = vector.load %arg10[%246, %c0_65, %c0_66] : memref<9x16x384xf32, #tpu.memory_space<vmem>>, vector<1x16x384xf32>
    %248 = vector.shape_cast %247 : vector<1x16x384xf32> to vector<16x384xf32>
    %249 = arith.truncf %245 : vector<16x128xf32> to vector<16x128xbf16>
    %cst_67 = arith.constant dense<0.000000e+00> : vector<16x384xf32>
    %250 = tpu.matmul %249, %12, %cst_67 {dimension_numbers = #tpu.dot_dimension_numbers<[1], [0], [0], [1], [0, 0, 1, 1], [], []>} : vector<16x128xbf16>, vector<128x384xbf16>, vector<16x384xf32> -> vector<16x384xf32>
    %251 = vector.extract_strided_slice %248 {offsets = [0, 0], sizes = [16, 128], strides = [1, 1]} : vector<16x384xf32> to vector<16x128xf32>
    %252 = vector.extract_strided_slice %250 {offsets = [0, 0], sizes = [16, 128], strides = [1, 1]} : vector<16x384xf32> to vector<16x128xf32>
    %253 = arith.addf %251, %252 : vector<16x128xf32>
    %254 = arith.negf %253 : vector<16x128xf32>
    %255 = math.exp %254 : vector<16x128xf32>
    %cst_68 = arith.constant 1.000000e+00 : f32
    %256 = vector.broadcast %cst_68 : f32 to vector<16x128xf32>
    %257 = arith.addf %256, %255 : vector<16x128xf32>
    %258 = arith.divf %256, %257 : vector<16x128xf32>
    %259 = vector.extract_strided_slice %248 {offsets = [0, 128], sizes = [16, 128], strides = [1, 1]} : vector<16x384xf32> to vector<16x128xf32>
    %260 = vector.extract_strided_slice %250 {offsets = [0, 128], sizes = [16, 128], strides = [1, 1]} : vector<16x384xf32> to vector<16x128xf32>
    %261 = arith.addf %259, %260 : vector<16x128xf32>
    %262 = arith.negf %261 : vector<16x128xf32>
    %263 = math.exp %262 : vector<16x128xf32>
    %cst_69 = arith.constant 1.000000e+00 : f32
    %264 = vector.broadcast %cst_69 : f32 to vector<16x128xf32>
    %265 = arith.addf %264, %263 : vector<16x128xf32>
    %266 = arith.divf %264, %265 : vector<16x128xf32>
    %267 = vector.extract_strided_slice %248 {offsets = [0, 256], sizes = [16, 128], strides = [1, 1]} : vector<16x384xf32> to vector<16x128xf32>
    %268 = vector.extract_strided_slice %250 {offsets = [0, 256], sizes = [16, 128], strides = [1, 1]} : vector<16x384xf32> to vector<16x128xf32>
    %269 = arith.addf %268, %15 : vector<16x128xf32>
    %270 = arith.mulf %258, %269 : vector<16x128xf32>
    %271 = arith.addf %267, %270 : vector<16x128xf32>
    %272 = math.tanh %271 : vector<16x128xf32>
    %273 = arith.subf %245, %272 : vector<16x128xf32>
    %274 = arith.mulf %266, %273 : vector<16x128xf32>
    %275 = arith.addf %272, %274 : vector<16x128xf32>
    %276 = arith.truncf %275 : vector<16x128xf32> to vector<16x128xbf16>
    %277 = arith.index_cast %c6_i32 : i32 to index
    %c0_70 = arith.constant 0 : index
    %c0_71 = arith.constant 0 : index
    %278 = vector.load %arg8[%277, %c0_70, %c0_71] : memref<9x16x128xbf16, #tpu.memory_space<vmem>>, vector<1x16x128xbf16>
    %279 = vector.shape_cast %278 : vector<1x16x128xbf16> to vector<16x128xbf16>
    %280 = vector.shape_cast %276 : vector<16x128xbf16> to vector<1x16x128xbf16>
    tpu.vector_store %arg8[%277, %c0_70, %c0_71], %280 {strides = array<i32>} : memref<9x16x128xbf16, #tpu.memory_space<vmem>>, vector<1x16x128xbf16>,
    %281 = arith.addi %16, %c6_i32 : i32
    %c9_i32_72 = arith.constant 9 : i32
    %282 = arith.cmpi slt, %281, %c9_i32_72 : i32
    %283 = arith.select %282, %275, %245 : vector<16x128xf32>
    %c7_i32 = arith.constant 7 : i32
    %284 = arith.index_cast %c7_i32 : i32 to index
    %c0_73 = arith.constant 0 : index
    %c0_74 = arith.constant 0 : index
    %285 = vector.load %arg10[%284, %c0_73, %c0_74] : memref<9x16x384xf32, #tpu.memory_space<vmem>>, vector<1x16x384xf32>
    %286 = vector.shape_cast %285 : vector<1x16x384xf32> to vector<16x384xf32>
    %287 = arith.truncf %283 : vector<16x128xf32> to vector<16x128xbf16>
    %cst_75 = arith.constant dense<0.000000e+00> : vector<16x384xf32>
    %288 = tpu.matmul %287, %12, %cst_75 {dimension_numbers = #tpu.dot_dimension_numbers<[1], [0], [0], [1], [0, 0, 1, 1], [], []>} : vector<16x128xbf16>, vector<128x384xbf16>, vector<16x384xf32> -> vector<16x384xf32>
    %289 = vector.extract_strided_slice %286 {offsets = [0, 0], sizes = [16, 128], strides = [1, 1]} : vector<16x384xf32> to vector<16x128xf32>
    %290 = vector.extract_strided_slice %288 {offsets = [0, 0], sizes = [16, 128], strides = [1, 1]} : vector<16x384xf32> to vector<16x128xf32>
    %291 = arith.addf %289, %290 : vector<16x128xf32>
    %292 = arith.negf %291 : vector<16x128xf32>
    %293 = math.exp %292 : vector<16x128xf32>
    %cst_76 = arith.constant 1.000000e+00 : f32
    %294 = vector.broadcast %cst_76 : f32 to vector<16x128xf32>
    %295 = arith.addf %294, %293 : vector<16x128xf32>
    %296 = arith.divf %294, %295 : vector<16x128xf32>
    %297 = vector.extract_strided_slice %286 {offsets = [0, 128], sizes = [16, 128], strides = [1, 1]} : vector<16x384xf32> to vector<16x128xf32>
    %298 = vector.extract_strided_slice %288 {offsets = [0, 128], sizes = [16, 128], strides = [1, 1]} : vector<16x384xf32> to vector<16x128xf32>
    %299 = arith.addf %297, %298 : vector<16x128xf32>
    %300 = arith.negf %299 : vector<16x128xf32>
    %301 = math.exp %300 : vector<16x128xf32>
    %cst_77 = arith.constant 1.000000e+00 : f32
    %302 = vector.broadcast %cst_77 : f32 to vector<16x128xf32>
    %303 = arith.addf %302, %301 : vector<16x128xf32>
    %304 = arith.divf %302, %303 : vector<16x128xf32>
    %305 = vector.extract_strided_slice %286 {offsets = [0, 256], sizes = [16, 128], strides = [1, 1]} : vector<16x384xf32> to vector<16x128xf32>
    %306 = vector.extract_strided_slice %288 {offsets = [0, 256], sizes = [16, 128], strides = [1, 1]} : vector<16x384xf32> to vector<16x128xf32>
    %307 = arith.addf %306, %15 : vector<16x128xf32>
    %308 = arith.mulf %296, %307 : vector<16x128xf32>
    %309 = arith.addf %305, %308 : vector<16x128xf32>
    %310 = math.tanh %309 : vector<16x128xf32>
    %311 = arith.subf %283, %310 : vector<16x128xf32>
    %312 = arith.mulf %304, %311 : vector<16x128xf32>
    %313 = arith.addf %310, %312 : vector<16x128xf32>
    %314 = arith.truncf %313 : vector<16x128xf32> to vector<16x128xbf16>
    %315 = arith.index_cast %c7_i32 : i32 to index
    %c0_78 = arith.constant 0 : index
    %c0_79 = arith.constant 0 : index
    %316 = vector.load %arg8[%315, %c0_78, %c0_79] : memref<9x16x128xbf16, #tpu.memory_space<vmem>>, vector<1x16x128xbf16>
    %317 = vector.shape_cast %316 : vector<1x16x128xbf16> to vector<16x128xbf16>
    %318 = vector.shape_cast %314 : vector<16x128xbf16> to vector<1x16x128xbf16>
    tpu.vector_store %arg8[%315, %c0_78, %c0_79], %318 {strides = array<i32>} : memref<9x16x128xbf16, #tpu.memory_space<vmem>>, vector<1x16x128xbf16>,
    %319 = arith.addi %16, %c7_i32 : i32
    %c9_i32_80 = arith.constant 9 : i32
    %320 = arith.cmpi slt, %319, %c9_i32_80 : i32
    %321 = arith.select %320, %313, %283 : vector<16x128xf32>
    %c8_i32 = arith.constant 8 : i32
    %322 = arith.index_cast %c8_i32 : i32 to index
    %c0_81 = arith.constant 0 : index
    %c0_82 = arith.constant 0 : index
    %323 = vector.load %arg10[%322, %c0_81, %c0_82] : memref<9x16x384xf32, #tpu.memory_space<vmem>>, vector<1x16x384xf32>
    %324 = vector.shape_cast %323 : vector<1x16x384xf32> to vector<16x384xf32>
    %325 = arith.truncf %321 : vector<16x128xf32> to vector<16x128xbf16>
    %cst_83 = arith.constant dense<0.000000e+00> : vector<16x384xf32>
    %326 = tpu.matmul %325, %12, %cst_83 {dimension_numbers = #tpu.dot_dimension_numbers<[1], [0], [0], [1], [0, 0, 1, 1], [], []>} : vector<16x128xbf16>, vector<128x384xbf16>, vector<16x384xf32> -> vector<16x384xf32>
    %327 = vector.extract_strided_slice %324 {offsets = [0, 0], sizes = [16, 128], strides = [1, 1]} : vector<16x384xf32> to vector<16x128xf32>
    %328 = vector.extract_strided_slice %326 {offsets = [0, 0], sizes = [16, 128], strides = [1, 1]} : vector<16x384xf32> to vector<16x128xf32>
    %329 = arith.addf %327, %328 : vector<16x128xf32>
    %330 = arith.negf %329 : vector<16x128xf32>
    %331 = math.exp %330 : vector<16x128xf32>
    %cst_84 = arith.constant 1.000000e+00 : f32
    %332 = vector.broadcast %cst_84 : f32 to vector<16x128xf32>
    %333 = arith.addf %332, %331 : vector<16x128xf32>
    %334 = arith.divf %332, %333 : vector<16x128xf32>
    %335 = vector.extract_strided_slice %324 {offsets = [0, 128], sizes = [16, 128], strides = [1, 1]} : vector<16x384xf32> to vector<16x128xf32>
    %336 = vector.extract_strided_slice %326 {offsets = [0, 128], sizes = [16, 128], strides = [1, 1]} : vector<16x384xf32> to vector<16x128xf32>
    %337 = arith.addf %335, %336 : vector<16x128xf32>
    %338 = arith.negf %337 : vector<16x128xf32>
    %339 = math.exp %338 : vector<16x128xf32>
    %cst_85 = arith.constant 1.000000e+00 : f32
    %340 = vector.broadcast %cst_85 : f32 to vector<16x128xf32>
    %341 = arith.addf %340, %339 : vector<16x128xf32>
    %342 = arith.divf %340, %341 : vector<16x128xf32>
    %343 = vector.extract_strided_slice %324 {offsets = [0, 256], sizes = [16, 128], strides = [1, 1]} : vector<16x384xf32> to vector<16x128xf32>
    %344 = vector.extract_strided_slice %326 {offsets = [0, 256], sizes = [16, 128], strides = [1, 1]} : vector<16x384xf32> to vector<16x128xf32>
    %345 = arith.addf %344, %15 : vector<16x128xf32>
    %346 = arith.mulf %334, %345 : vector<16x128xf32>
    %347 = arith.addf %343, %346 : vector<16x128xf32>
    %348 = math.tanh %347 : vector<16x128xf32>
    %349 = arith.subf %321, %348 : vector<16x128xf32>
    %350 = arith.mulf %342, %349 : vector<16x128xf32>
    %351 = arith.addf %348, %350 : vector<16x128xf32>
    %352 = arith.truncf %351 : vector<16x128xf32> to vector<16x128xbf16>
    %353 = arith.index_cast %c8_i32 : i32 to index
    %c0_86 = arith.constant 0 : index
    %c0_87 = arith.constant 0 : index
    %354 = vector.load %arg8[%353, %c0_86, %c0_87] : memref<9x16x128xbf16, #tpu.memory_space<vmem>>, vector<1x16x128xbf16>
    %355 = vector.shape_cast %354 : vector<1x16x128xbf16> to vector<16x128xbf16>
    %356 = vector.shape_cast %352 : vector<16x128xbf16> to vector<1x16x128xbf16>
    tpu.vector_store %arg8[%353, %c0_86, %c0_87], %356 {strides = array<i32>} : memref<9x16x128xbf16, #tpu.memory_space<vmem>>, vector<1x16x128xbf16>,
    %357 = arith.addi %16, %c8_i32 : i32
    %c9_i32_88 = arith.constant 9 : i32
    %358 = arith.cmpi slt, %357, %c9_i32_88 : i32
    %359 = arith.select %358, %351, %321 : vector<16x128xf32>
    %c9_i32_89 = arith.constant 9 : i32
    %c0_90 = arith.constant 0 : index
    %c0_91 = arith.constant 0 : index
    %360 = vector.load %arg9[%c0_90, %c0_91] : memref<16x128xf32, #tpu.memory_space<vmem>>, vector<16x128xf32>
    tpu.vector_store %arg9[%c0_90, %c0_91], %359 {strides = array<i32>} : memref<16x128xf32, #tpu.memory_space<vmem>>, vector<16x128xf32>,
    return
  }
  func.func @transform_0(%arg0: i32, %arg1: i32) -> (i32, i32, i32) {
    %c0_i32 = arith.constant 0 : i32
    %c0_i32_0 = arith.constant 0 : i32
    return %arg1, %arg0, %c0_i32 : i32, i32, i32
  }
  func.func @transform_1(%arg0: i32, %arg1: i32) -> (i32, i32) {
    %c0_i32 = arith.constant 0 : i32
    %c0_i32_0 = arith.constant 0 : i32
    %c0_i32_1 = arith.constant 0 : i32
    return %c0_i32, %c0_i32_0 : i32, i32
  }
  func.func @transform_2(%arg0: i32, %arg1: i32) -> (i32, i32) {
    %c0_i32 = arith.constant 0 : i32
    %c0_i32_0 = arith.constant 0 : i32
    %c0_i32_1 = arith.constant 0 : i32
    return %c0_i32, %c0_i32_0 : i32, i32
  }
  func.func @transform_3(%arg0: i32, %arg1: i32) -> (i32, i32) {
    %c0_i32 = arith.constant 0 : i32
    %c0_i32_0 = arith.constant 0 : i32
    %c0_i32_1 = arith.constant 0 : i32
    return %c0_i32, %c0_i32_0 : i32, i32
  }
  func.func @transform_4(%arg0: i32, %arg1: i32) -> (i32, i32) {
    %c0_i32 = arith.constant 0 : i32
    %c0_i32_0 = arith.constant 0 : i32
    %c0_i32_1 = arith.constant 0 : i32
    return %c0_i32, %c0_i32_0 : i32, i32
  }
  func.func @transform_5(%arg0: i32, %arg1: i32) -> (i32, i32) {
    %c0_i32 = arith.constant 0 : i32
    %c0_i32_0 = arith.constant 0 : i32
    return %arg0, %c0_i32 : i32, i32
  }
  func.func @transform_6(%arg0: i32, %arg1: i32) -> (i32, i32, i32) {
    %c0_i32 = arith.constant 0 : i32
    %c0_i32_0 = arith.constant 0 : i32
    return %arg1, %arg0, %c0_i32 : i32, i32, i32
  }
  func.func @transform_7(%arg0: i32, %arg1: i32) -> (i32, i32) {
    %c0_i32 = arith.constant 0 : i32
    %c0_i32_0 = arith.constant 0 : i32
    return %arg0, %c0_i32 : i32, i32
  }
}

</mosaic_0001>

<llo_original>
// kernel: tpu_custom_call.1
$region0: #{tpu_custom_call.1}
  #allocation0 [shape = 'u32[]', space=smem, size = 0x4, offset = 0x4, fixed_abs, tag = 'smem constant byte address 0x4 - core index']
  #allocation1 [shape = 'u32[144,128]{1,0:T(1,128)}', space=vmem, size = 0x12000, scoped, tag = 'internal scratch']
  #allocation2 [shape = 'f32[9,16,384]{2,1,0:T(8,128)}', space=vmem, size = 0x36000, scoped, tag = 'scratch operand']
  %s0 = inlined_call_operand.hbm [shape: bf16[9,16,32], index: 0, kind: input, shape index: {}]
  %s1 = inlined_call_operand.hbm [shape: bf16[32,384], index: 1, kind: input, shape index: {}]
  %s2 = inlined_call_operand.hbm [shape: bf16[128,384], index: 2, kind: input, shape index: {}]
  %s3 = inlined_call_operand.vmem [shape: f32[1,384], index: 3, kind: input, shape index: {}]
  %s4 = inlined_call_operand.vmem [shape: f32[1,128], index: 4, kind: input, shape index: {}]
  %s5 = inlined_call_operand.hbm [shape: f32[16,128], index: 5, kind: input, shape index: {}, may-alias: {5,7}]
  %s6 = inlined_call_operand.hbm [shape: bf16[9,16,128], index: 6, kind: output, shape index: {0}]
  %s7 = inlined_call_operand.hbm [shape: f32[16,128], index: 7, kind: output, shape index: {1}, may-alias: {5,7}]
  %8 = xla_tuple %s6, %s7
  %s9 = sld [smem:[#allocation0]]
  $region62: #{tpu_custom_call.1} parent=0
    _
  %s11 = ssub.s32 1, %s9
  %s12 = scalar_select 0, %s11, %s9
  $region1: #{tpu_custom_call.1} parent=0
    #allocation3 [shape = 'u8[36864]{0}', space=vmem, size = 0x9000, scoped, tag = 'input window, operand 0, single buffered']
    #allocation4 [shape = 's32[1]{0}', space=sflag, size = 0x4, scoped, tag = 'scoped memory for tpu_custom_call.1']
    #allocation5 [shape = 's32[1]{0}', space=sflag, size = 0x4, scoped, tag = 'scoped memory for tpu_custom_call.1']
    #allocation6 [shape = 'u8[24576]{0}', space=vmem, size = 0x6000, scoped, tag = 'input window, operand 1, single buffered']
    #allocation7 [shape = 's32[1]{0}', space=sflag, size = 0x4, scoped, tag = 'scoped memory for tpu_custom_call.1']
    #allocation8 [shape = 'u8[98304]{0}', space=vmem, size = 0x18000, scoped, tag = 'input window, operand 2, single buffered']
    #allocation9 [shape = 'u8[8192]{0}', space=vmem, size = 0x2000, scoped, tag = 'input window, operand 5, single buffered']
    #allocation10 [shape = 's32[1]{0}', space=sflag, size = 0x4, scoped, tag = 'scoped memory for tpu_custom_call.1']
    #allocation11 [shape = 'u8[36864]{0}', space=vmem, size = 0x9000, scoped, tag = 'output window, operand 0, single buffered']
    #allocation12 [shape = 'u8[8192]{0}', space=vmem, size = 0x2000, scoped, tag = 'output window, operand 1, single buffered']
    #allocation13 [shape = 's32[1]{0}', space=sflag, size = 0x4, scoped, tag = 'scoped memory for tpu_custom_call.1']
    %13 = vsyncpa [#allocation4], 0
    %14 = vsyncpa [#allocation7], 0
    %15 = vsyncpa [#allocation10], 0
    %16 = vsyncpa [#allocation5], 0
    %17 = vsyncpa [#allocation13], 0
    // Predicated region
    $region2: #{tpu_custom_call.1} parent=1 // pred_check
      _
    $region3: #{tpu_custom_call.1} parent=1 // pred_check_branch
      %19 = sbr.rel (0) target = $region5
    $region4: #{tpu_custom_call.1} parent=1 // pred_region
      %s21 = ssub.s32 1152, 1152
      %22 = vsyncadd [#allocation4], %s21
      %s23 = sshll.u32 [#allocation3], 4
      %s24 = int_to_ptr.vmem [resolvable:$true] %s23
      %29 = dma.hbm_to_vmem [thread:$0]  %s0, 1152, %s24, [#allocation4], 64, 64, 4
    $region5: #{tpu_custom_call.1} parent=1 // pred_fallthru
      _
    // Predicated region
    $region6: #{tpu_custom_call.1} parent=1 // pred_check
      _
    $region7: #{tpu_custom_call.1} parent=1 // pred_check_branch
      %31 = sbr.rel (0) target = $region9
    $region8: #{tpu_custom_call.1} parent=1 // pred_region
      %s33 = ssub.s32 768, 768
      %34 = vsyncadd [#allocation7], %s33
      %s35 = sshll.u32 [#allocation6], 4
      %s36 = int_to_ptr.vmem [resolvable:$true] %s35
      %41 = dma.hbm_to_vmem [thread:$0]  %s1, 768, %s36, [#allocation7], 192, 192, 12
    $region9: #{tpu_custom_call.1} parent=1 // pred_fallthru
      _
    // Predicated region
    $region10: #{tpu_custom_call.1} parent=1 // pred_check
      _
    $region11: #{tpu_custom_call.1} parent=1 // pred_check_branch
      %43 = sbr.rel (0) target = $region13
    $region12: #{tpu_custom_call.1} parent=1 // pred_region
      %s45 = ssub.s32 3072, 3072
      %46 = vsyncadd [#allocation7], %s45
      %s47 = sshll.u32 [#allocation8], 4
      %s48 = int_to_ptr.vmem [resolvable:$true] %s47
      %53 = dma.hbm_to_vmem [thread:$0]  %s2, 3072, %s48, [#allocation7], 192, 192, 12
    $region13: #{tpu_custom_call.1} parent=1 // pred_fallthru
      _
    // Predicated region
    $region14: #{tpu_custom_call.1} parent=1 // pred_check
      _
    $region15: #{tpu_custom_call.1} parent=1 // pred_check_branch
      %55 = sbr.rel (0) target = $region17
    $region16: #{tpu_custom_call.1} parent=1 // pred_region
      _
    $region17: #{tpu_custom_call.1} parent=1 // pred_fallthru
      _
    // Predicated region
    $region18: #{tpu_custom_call.1} parent=1 // pred_check
      _
    $region19: #{tpu_custom_call.1} parent=1 // pred_check_branch
      %57 = sbr.rel (0) target = $region21
    $region20: #{tpu_custom_call.1} parent=1 // pred_region
      _
    $region21: #{tpu_custom_call.1} parent=1 // pred_fallthru
      _
    // Predicated region
    $region22: #{tpu_custom_call.1} parent=1 // pred_check
      _
    $region23: #{tpu_custom_call.1} parent=1 // pred_check_branch
      %59 = sbr.rel (0) target = $region25
    $region24: #{tpu_custom_call.1} parent=1 // pred_region
      %s61 = ssub.s32 256, 256
      %62 = vsyncadd [#allocation10], %s61
      %s63 = sshll.u32 [#allocation9], 4
      %s64 = int_to_ptr.vmem [resolvable:$true] %s63
      %69 = dma.hbm_to_vmem [thread:$0]  %s5, 256, %s64, [#allocation10], 128, 128, 8
    $region25: #{tpu_custom_call.1} parent=1 // pred_fallthru
      _
    // Predicated region
    $region26: #{tpu_custom_call.1} parent=1 // pred_check
      _
    $region27: #{tpu_custom_call.1} parent=1 // pred_check_branch
      %71 = sbr.rel (0) target = $region29
    $region28: #{tpu_custom_call.1} parent=1 // pred_region
      %72 = dma.done [#allocation4], 1152
    $region29: #{tpu_custom_call.1} parent=1 // pred_fallthru
      _
    // Predicated region
    $region30: #{tpu_custom_call.1} parent=1 // pred_check
      _
    $region31: #{tpu_custom_call.1} parent=1 // pred_check_branch
      %74 = sbr.rel (0) target = $region33
    $region32: #{tpu_custom_call.1} parent=1 // pred_region
      %75 = dma.done [#allocation7], 768
    $region33: #{tpu_custom_call.1} parent=1 // pred_fallthru
      _
    // Predicated region
    $region34: #{tpu_custom_call.1} parent=1 // pred_check
      _
    $region35: #{tpu_custom_call.1} parent=1 // pred_check_branch
      %77 = sbr.rel (0) target = $region37
    $region36: #{tpu_custom_call.1} parent=1 // pred_region
      %78 = dma.done [#allocation7], 3072
    $region37: #{tpu_custom_call.1} parent=1 // pred_fallthru
      _
    // Predicated region
    $region38: #{tpu_custom_call.1} parent=1 // pred_check
      _
    $region39: #{tpu_custom_call.1} parent=1 // pred_check_branch
      %80 = sbr.rel (0) target = $region41
    $region40: #{tpu_custom_call.1} parent=1 // pred_region
      %81 = dma.done [#allocation10], 256
    $region41: #{tpu_custom_call.1} parent=1 // pred_fallthru
      _
    %p83 = scmp.eq.s32.totalorder 0, 0
    // Predicated region
    $region42: #{tpu_custom_call.1} parent=1 // pred_check
      %p84 = pneg %p83
    $region43: #{tpu_custom_call.1} parent=1 // pred_check_branch
      %86 = sbr.rel (%p84) target = $region45
    $region44: #{tpu_custom_call.1} parent=1 // pred_region
      %v87 = vld [vmem:[#allocation9] sm:$0xff]
      %v88 = vld [vmem:[#allocation9 + $0x8] sm:$0xff]
      %89 = vst [vmem:[#allocation12] sm:$0xff] %v87
      %90 = vst [vmem:[#allocation12 + $0x8] sm:$0xff] %v88
    $region45: #{tpu_custom_call.1} parent=1 // pred_fallthru
      _
    %v91 = vld [vmem:[#allocation3] sm:$0xf]
    %v92 = vld [vmem:[#allocation3 + $0x4] sm:$0xf]
    %v93 = vld [vmem:[#allocation3 + $0x8] sm:$0xf]
    %v94 = vld [vmem:[#allocation3 + $0xc] sm:$0xf]
    %v95 = vld [vmem:[#allocation3 + $0x10] sm:$0xf]
    %v96 = vld [vmem:[#allocation3 + $0x14] sm:$0xf]
    %v97 = vld [vmem:[#allocation3 + $0x18] sm:$0xf]
    %v98 = vld [vmem:[#allocation3 + $0x1c] sm:$0xf]
    %v99 = vld [vmem:[#allocation3 + $0x20] sm:$0xf]
    %v100 = vld [vmem:[#allocation3 + $0x24] sm:$0xf]
    %v101 = vld [vmem:[#allocation3 + $0x28] sm:$0xf]
    %v102 = vld [vmem:[#allocation3 + $0x2c] sm:$0xf]
    %v103 = vld [vmem:[#allocation3 + $0x30] sm:$0xf]
    %v104 = vld [vmem:[#allocation3 + $0x34] sm:$0xf]
    %v105 = vld [vmem:[#allocation3 + $0x38] sm:$0xf]
    %v106 = vld [vmem:[#allocation3 + $0x3c] sm:$0xf]
    %v107 = vld [vmem:[#allocation3 + $0x40] sm:$0xf]
    %v108 = vld [vmem:[#allocation3 + $0x44] sm:$0xf]
    %v109 = vld [vmem:[#allocation6] sm:$0xff]
    %v110 = vld [vmem:[#allocation6 + $0x8] sm:$0xf]
    %v111 = vld [vmem:[#allocation6 + $0xc] sm:$0xff]
    %v112 = vld [vmem:[#allocation6 + $0x14] sm:$0xf]
    %v113 = vld [vmem:[#allocation6 + $0x18] sm:$0xff]
    %v114 = vld [vmem:[#allocation6 + $0x20] sm:$0xf]
    %v115 = vld [vmem:[#allocation6 + $0x24] sm:$0xff]
    %v116 = vld [vmem:[#allocation6 + $0x2c] sm:$0xf]
    %v117 = vld [vmem:[%s3] sm:$0x7]
    %v119 = vlaneseq
    %v120 = vshrl.u32 %v119, 7
    %v121 = vsub.s32 0, %v120
    %v122 = vrot.slane %v117, %v121
    %v123 = vlaneseq
    %v124 = vshrl.u32 %v123, 7
    %v125 = vsub.s32 1, %v124
    %v126 = vrot.slane %v117, %v125
    %v127 = vlaneseq
    %v128 = vshrl.u32 %v127, 7
    %v129 = vsub.s32 2, %v128
    %v130 = vrot.slane %v117, %v129
    %v152 = vunpack.c.l.b16 %v91
    %v153 = vunpack.c.l.b16 %v92
    %v154 = vunpack.c.l.b16 %v93
    %v155 = vunpack.c.l.b16 %v94
    %v156 = vunpack.c.l.b16 %v95
    %v157 = vunpack.c.l.b16 %v96
    %v158 = vunpack.c.l.b16 %v97
    %v159 = vunpack.c.l.b16 %v98
    %v160 = vunpack.c.l.b16 %v99
    %v161 = vunpack.c.l.b16 %v100
    %v162 = vunpack.c.l.b16 %v101
    %v163 = vunpack.c.l.b16 %v102
    %v164 = vunpack.c.l.b16 %v103
    %v165 = vunpack.c.l.b16 %v104
    %v166 = vunpack.c.l.b16 %v105
    %v167 = vunpack.c.l.b16 %v106
    %v168 = vunpack.c.l.b16 %v107
    %v169 = vunpack.c.l.b16 %v108
    %v170 = vpack.c.b16 %v153, %v152
    %v171 = vpack.c.b16 %v155, %v154
    %v172 = vpack.c.b16 %v157, %v156
    %v173 = vpack.c.b16 %v159, %v158
    %v174 = vpack.c.b16 %v161, %v160
    %v175 = vpack.c.b16 %v163, %v162
    %v176 = vpack.c.b16 %v165, %v164
    %v177 = vpack.c.b16 %v167, %v166
    %v178 = vpack.c.b16 %v169, %v168
    %v187 = vunpack.c.l.b16 %v109
    %v188 = vunpack.c.h.b16 %v109
    %v189 = vunpack.c.l.b16 %v110
    %v190 = vunpack.c.l.b16 %v111
    %v191 = vunpack.c.h.b16 %v111
    %v192 = vunpack.c.l.b16 %v112
    %v193 = vunpack.c.l.b16 %v113
    %v194 = vunpack.c.h.b16 %v113
    %v195 = vunpack.c.l.b16 %v114
    %v196 = vunpack.c.l.b16 %v115
    %v197 = vunpack.c.h.b16 %v115
    %v198 = vunpack.c.l.b16 %v116
    %v199 = vpack.c.b16 %v190, %v187
    %v200 = vpack.c.b16 %v191, %v188
    %v201 = vpack.c.b16 %v192, %v189
    %v202 = vpack.c.b16 %v196, %v193
    %v203 = vpack.c.b16 %v197, %v194
    %v204 = vpack.c.b16 %v198, %v195
    %vm211 = vcmask 261120
    %v213 = vsel %vm211, %v170, 0
    %v216 = vsel %vm211, %v171, 0
    %v219 = vsel %vm211, %v172, 0
    %v222 = vsel %vm211, %v173, 0
    %v225 = vsel %vm211, %v174, 0
    %v228 = vsel %vm211, %v175, 0
    %v231 = vsel %vm211, %v176, 0
    %v234 = vsel %vm211, %v177, 0
    %v237 = vsel %vm211, %v178, 0
    %239 = vmatprep.subr.bf16.mxu0 %v200
    %240 = vmatpush1.bf16.msra.mxu0 %v199
    %241 = vmatprep.subr.bf16.mxu0 %v203
    %242 = vmatpush1.bf16.msra.mxu0 %v202
    %243 = vmatprep.subr.bf16.mxu0 0
    %244 = vmatpush1.bf16.msra.mxu0 0
    %245 = vmatprep.subr.bf16.mxu0 0
    %246 = vmatpush1.bf16.msra.mxu0 0
    %247 = vmatprep.subr.bf16.mxu0 0
    %248 = vmatpush1.bf16.msra.mxu0 0
    %249 = vmatprep.subr.bf16.mxu0 0
    %250 = vmatpush1.bf16.msra.mxu0 0
    %251 = vmatprep.subr.bf16.mxu0 0
    %252 = vmatpush1.bf16.msra.mxu0 0
    %253 = vmatprep.subr.bf16.mxu0 0
    %254 = vmatpush1.bf16.msra.mxu0 0
    %255 = vmatprep.subr.bf16.mxu0 0
    %256 = vmatpush1.bf16.msra.mxu0 0
    %257 = vmatprep.subr.bf16.mxu0 0
    %258 = vmatpush1.bf16.msra.mxu0 0
    %259 = vmatprep.subr.bf16.mxu0 0
    %260 = vmatpush1.bf16.msra.mxu0 0
    %261 = vmatprep.subr.bf16.mxu0 0
    %262 = vmatpush1.bf16.msra.mxu0 0
    %263 = vmatprep.subr.bf16.mxu0 0
    %264 = vmatpush1.bf16.msra.mxu0 0
    %265 = vmatprep.subr.bf16.mxu0 0
    %266 = vmatpush1.bf16.msra.mxu0 0
    %267 = vmatprep.subr.bf16.mxu0 0
    %268 = vmatpush1.bf16.msra.mxu0 0
    %269 = vmatprep.subr.bf16.mxu0 0
    %270 = vmatpush1.bf16.msra.mxu0 0
    %271 = vmatprep.mubr.bf16.mxu0 0
    %272 = vmatmul.mubr.bf16.gmra.mrb[0].mxu0 %v213
    %v273 = vpop.f32.mrb[0].mxu0
    %v274 = vadd.f32 %v122, %v273
    %v275 = vpop.f32.mrb[0].mxu0
    %v276 = vadd.f32 %v126, %v275
    %v277 = vpop.f32.mrb[0].mxu0
    %v278 = vadd.f32 %v122, %v277
    %v279 = vpop.f32.mrb[0].mxu0
    %v280 = vadd.f32 %v126, %v279
    %281 = vmatprep.mubr.bf16.mxu0 0
    %282 = vmatmul.mubr.bf16.gmra.mrb[0].mxu0 %v216
    %v283 = vpop.f32.mrb[0].mxu0
    %v284 = vadd.f32 %v122, %v283
    %v285 = vpop.f32.mrb[0].mxu0
    %v286 = vadd.f32 %v126, %v285
    %v287 = vpop.f32.mrb[0].mxu0
    %v288 = vadd.f32 %v122, %v287
    %v289 = vpop.f32.mrb[0].mxu0
    %v290 = vadd.f32 %v126, %v289
    %291 = vmatprep.mubr.bf16.mxu0 0
    %292 = vmatmul.mubr.bf16.gmra.mrb[0].mxu0 %v219
    %v293 = vpop.f32.mrb[0].mxu0
    %v294 = vadd.f32 %v122, %v293
    %v295 = vpop.f32.mrb[0].mxu0
    %v296 = vadd.f32 %v126, %v295
    %v297 = vpop.f32.mrb[0].mxu0
    %v298 = vadd.f32 %v122, %v297
    %v299 = vpop.f32.mrb[0].mxu0
    %v300 = vadd.f32 %v126, %v299
    %301 = vmatprep.mubr.bf16.mxu0 0
    %302 = vmatmul.mubr.bf16.gmra.mrb[0].mxu0 %v222
    %v303 = vpop.f32.mrb[0].mxu0
    %v304 = vadd.f32 %v122, %v303
    %v305 = vpop.f32.mrb[0].mxu0
    %v306 = vadd.f32 %v126, %v305
    %v307 = vpop.f32.mrb[0].mxu0
    %v308 = vadd.f32 %v122, %v307
    %v309 = vpop.f32.mrb[0].mxu0
    %v310 = vadd.f32 %v126, %v309
    %311 = vmatprep.mubr.bf16.mxu0 0
    %312 = vmatmul.mubr.bf16.gmra.mrb[0].mxu0 %v225
    %v313 = vpop.f32.mrb[0].mxu0
    %v314 = vadd.f32 %v122, %v313
    %v315 = vpop.f32.mrb[0].mxu0
    %v316 = vadd.f32 %v126, %v315
    %v317 = vpop.f32.mrb[0].mxu0
    %v318 = vadd.f32 %v122, %v317
    %v319 = vpop.f32.mrb[0].mxu0
    %v320 = vadd.f32 %v126, %v319
    %321 = vmatprep.mubr.bf16.mxu0 0
    %322 = vmatmul.mubr.bf16.gmra.mrb[0].mxu0 %v228
    %v323 = vpop.f32.mrb[0].mxu0
    %v324 = vadd.f32 %v122, %v323
    %v325 = vpop.f32.mrb[0].mxu0
    %v326 = vadd.f32 %v126, %v325
    %v327 = vpop.f32.mrb[0].mxu0
    %v328 = vadd.f32 %v122, %v327
    %v329 = vpop.f32.mrb[0].mxu0
    %v330 = vadd.f32 %v126, %v329
    %331 = vmatprep.mubr.bf16.mxu0 0
    %332 = vmatmul.mubr.bf16.gmra.mrb[0].mxu0 %v231
    %v333 = vpop.f32.mrb[0].mxu0
    %v334 = vadd.f32 %v122, %v333
    %v335 = vpop.f32.mrb[0].mxu0
    %v336 = vadd.f32 %v126, %v335
    %v337 = vpop.f32.mrb[0].mxu0
    %v338 = vadd.f32 %v122, %v337
    %v339 = vpop.f32.mrb[0].mxu0
    %v340 = vadd.f32 %v126, %v339
    %341 = vmatprep.mubr.bf16.mxu0 0
    %342 = vmatmul.mubr.bf16.gmra.mrb[0].mxu0 %v234
    %v343 = vpop.f32.mrb[0].mxu0
    %v344 = vadd.f32 %v122, %v343
    %v345 = vpop.f32.mrb[0].mxu0
    %v346 = vadd.f32 %v126, %v345
    %v347 = vpop.f32.mrb[0].mxu0
    %v348 = vadd.f32 %v122, %v347
    %v349 = vpop.f32.mrb[0].mxu0
    %v350 = vadd.f32 %v126, %v349
    %351 = vmatprep.mubr.bf16.mxu0 0
    %352 = vmatmul.mubr.bf16.gmra.mrb[0].mxu0 %v237
    %v353 = vpop.f32.mrb[0].mxu0
    %v354 = vadd.f32 %v122, %v353
    %v355 = vpop.f32.mrb[0].mxu0
    %v356 = vadd.f32 %v126, %v355
    %v357 = vpop.f32.mrb[0].mxu0
    %v358 = vadd.f32 %v122, %v357
    %v359 = vpop.f32.mrb[0].mxu0
    %v360 = vadd.f32 %v126, %v359
    %361 = vdwg.mxu0
    %362 = vmatprep.subr.bf16.mxu0 0
    %363 = vmatpush1.bf16.msra.mxu0 %v201
    %364 = vmatprep.subr.bf16.mxu0 0
    %365 = vmatpush1.bf16.msra.mxu0 %v204
    %366 = vmatprep.subr.bf16.mxu0 0
    %367 = vmatpush1.bf16.msra.mxu0 0
    %368 = vmatprep.subr.bf16.mxu0 0
    %369 = vmatpush1.bf16.msra.mxu0 0
    %370 = vmatprep.subr.bf16.mxu0 0
    %371 = vmatpush1.bf16.msra.mxu0 0
    %372 = vmatprep.subr.bf16.mxu0 0
    %373 = vmatpush1.bf16.msra.mxu0 0
    %374 = vmatprep.subr.bf16.mxu0 0
    %375 = vmatpush1.bf16.msra.mxu0 0
    %376 = vmatprep.subr.bf16.mxu0 0
    %377 = vmatpush1.bf16.msra.mxu0 0
    %378 = vmatprep.subr.bf16.mxu0 0
    %379 = vmatpush1.bf16.msra.mxu0 0
    %380 = vmatprep.subr.bf16.mxu0 0
    %381 = vmatpush1.bf16.msra.mxu0 0
    %382 = vmatprep.subr.bf16.mxu0 0
    %383 = vmatpush1.bf16.msra.mxu0 0
    %384 = vmatprep.subr.bf16.mxu0 0
    %385 = vmatpush1.bf16.msra.mxu0 0
    %386 = vmatprep.subr.bf16.mxu0 0
    %387 = vmatpush1.bf16.msra.mxu0 0
    %388 = vmatprep.subr.bf16.mxu0 0
    %389 = vmatpush1.bf16.msra.mxu0 0
    %390 = vmatprep.subr.bf16.mxu0 0
    %391 = vmatpush1.bf16.msra.mxu0 0
    %392 = vmatprep.subr.bf16.mxu0 0
    %393 = vmatpush1.bf16.msra.mxu0 0
    %394 = vmatprep.mubr.bf16.mxu0 0
    %395 = vmatmul.mubr.bf16.gmra.mrb[0].mxu0 %v213
    %v396 = vpop.f32.mrb[0].mxu0
    %v397 = vadd.f32 %v130, %v396
    %v398 = vpop.f32.mrb[0].mxu0
    %v399 = vpop.f32.mrb[0].mxu0
    %v400 = vadd.f32 %v130, %v399
    %v401 = vpop.f32.mrb[0].mxu0
    %402 = vmatprep.mubr.bf16.mxu0 0
    %403 = vmatmul.mubr.bf16.gmra.mrb[0].mxu0 %v216
    %v404 = vpop.f32.mrb[0].mxu0
    %v405 = vadd.f32 %v130, %v404
    %v406 = vpop.f32.mrb[0].mxu0
    %v407 = vpop.f32.mrb[0].mxu0
    %v408 = vadd.f32 %v130, %v407
    %v409 = vpop.f32.mrb[0].mxu0
    %410 = vmatprep.mubr.bf16.mxu0 0
    %411 = vmatmul.mubr.bf16.gmra.mrb[0].mxu0 %v219
    %v412 = vpop.f32.mrb[0].mxu0
    %v413 = vadd.f32 %v130, %v412
    %v414 = vpop.f32.mrb[0].mxu0
    %v415 = vpop.f32.mrb[0].mxu0
    %v416 = vadd.f32 %v130, %v415
    %v417 = vpop.f32.mrb[0].mxu0
    %418 = vmatprep.mubr.bf16.mxu0 0
    %419 = vmatmul.mubr.bf16.gmra.mrb[0].mxu0 %v222
    %v420 = vpop.f32.mrb[0].mxu0
    %v421 = vadd.f32 %v130, %v420
    %v422 = vpop.f32.mrb[0].mxu0
    %v423 = vpop.f32.mrb[0].mxu0
    %v424 = vadd.f32 %v130, %v423
    %v425 = vpop.f32.mrb[0].mxu0
    %426 = vmatprep.mubr.bf16.mxu0 0
    %427 = vmatmul.mubr.bf16.gmra.mrb[0].mxu0 %v225
    %v428 = vpop.f32.mrb[0].mxu0
    %v429 = vadd.f32 %v130, %v428
    %v430 = vpop.f32.mrb[0].mxu0
    %v431 = vpop.f32.mrb[0].mxu0
    %v432 = vadd.f32 %v130, %v431
    %v433 = vpop.f32.mrb[0].mxu0
    %434 = vmatprep.mubr.bf16.mxu0 0
    %435 = vmatmul.mubr.bf16.gmra.mrb[0].mxu0 %v228
    %v436 = vpop.f32.mrb[0].mxu0
    %v437 = vadd.f32 %v130, %v436
    %v438 = vpop.f32.mrb[0].mxu0
    %v439 = vpop.f32.mrb[0].mxu0
    %v440 = vadd.f32 %v130, %v439
    %v441 = vpop.f32.mrb[0].mxu0
    %442 = vmatprep.mubr.bf16.mxu0 0
    %443 = vmatmul.mubr.bf16.gmra.mrb[0].mxu0 %v231
    %v444 = vpop.f32.mrb[0].mxu0
    %v445 = vadd.f32 %v130, %v444
    %v446 = vpop.f32.mrb[0].mxu0
    %v447 = vpop.f32.mrb[0].mxu0
    %v448 = vadd.f32 %v130, %v447
    %v449 = vpop.f32.mrb[0].mxu0
    %450 = vmatprep.mubr.bf16.mxu0 0
    %451 = vmatmul.mubr.bf16.gmra.mrb[0].mxu0 %v234
    %v452 = vpop.f32.mrb[0].mxu0
    %v453 = vadd.f32 %v130, %v452
    %v454 = vpop.f32.mrb[0].mxu0
    %v455 = vpop.f32.mrb[0].mxu0
    %v456 = vadd.f32 %v130, %v455
    %v457 = vpop.f32.mrb[0].mxu0
    %458 = vmatprep.mubr.bf16.mxu0 0
    %459 = vmatmul.mubr.bf16.gmra.mrb[0].mxu0 %v237
    %v460 = vpop.f32.mrb[0].mxu0
    %v461 = vadd.f32 %v130, %v460
    %v462 = vpop.f32.mrb[0].mxu0
    %v463 = vpop.f32.mrb[0].mxu0
    %v464 = vadd.f32 %v130, %v463
    %v465 = vpop.f32.mrb[0].mxu0
    %466 = vdwg.mxu0
    %467 = vst [vmem:[#allocation2] sm:$0xff] %v274
    %468 = vst [vmem:[#allocation2 + $0x8] sm:$0xff] %v276
    %469 = vst [vmem:[#allocation2 + $0x10] sm:$0xff] %v397
    %470 = vst [vmem:[#allocation2 + $0x18] sm:$0xff] %v278
    %471 = vst [vmem:[#allocation2 + $0x20] sm:$0xff] %v280
    %472 = vst [vmem:[#allocation2 + $0x28] sm:$0xff] %v400
    %473 = vst [vmem:[#allocation2 + $0x30] sm:$0xff] %v284
    %474 = vst [vmem:[#allocation2 + $0x38] sm:$0xff] %v286
    %475 = vst [vmem:[#allocation2 + $0x40] sm:$0xff] %v405
    %476 = vst [vmem:[#allocation2 + $0x48] sm:$0xff] %v288
    %477 = vst [vmem:[#allocation2 + $0x50] sm:$0xff] %v290
    %478 = vst [vmem:[#allocation2 + $0x58] sm:$0xff] %v408
    %479 = vst [vmem:[#allocation2 + $0x60] sm:$0xff] %v294
    %480 = vst [vmem:[#allocation2 + $0x68] sm:$0xff] %v296
    %481 = vst [vmem:[#allocation2 + $0x70] sm:$0xff] %v413
    %482 = vst [vmem:[#allocation2 + $0x78] sm:$0xff] %v298
    %483 = vst [vmem:[#allocation2 + $0x80] sm:$0xff] %v300
    %484 = vst [vmem:[#allocation2 + $0x88] sm:$0xff] %v416
    %485 = vst [vmem:[#allocation2 + $0x90] sm:$0xff] %v304
    %486 = vst [vmem:[#allocation2 + $0x98] sm:$0xff] %v306
    %487 = vst [vmem:[#allocation2 + $0xa0] sm:$0xff] %v421
    %488 = vst [vmem:[#allocation2 + $0xa8] sm:$0xff] %v308
    %489 = vst [vmem:[#allocation2 + $0xb0] sm:$0xff] %v310
    %490 = vst [vmem:[#allocation2 + $0xb8] sm:$0xff] %v424
    %491 = vst [vmem:[#allocation2 + $0xc0] sm:$0xff] %v314
    %492 = vst [vmem:[#allocation2 + $0xc8] sm:$0xff] %v316
    %493 = vst [vmem:[#allocation2 + $0xd0] sm:$0xff] %v429
    %494 = vst [vmem:[#allocation2 + $0xd8] sm:$0xff] %v318
    %495 = vst [vmem:[#allocation2 + $0xe0] sm:$0xff] %v320
    %496 = vst [vmem:[#allocation2 + $0xe8] sm:$0xff] %v432
    %497 = vst [vmem:[#allocation2 + $0xf0] sm:$0xff] %v324
    %498 = vst [vmem:[#allocation2 + $0xf8] sm:$0xff] %v326
    %499 = vst [vmem:[#allocation2 + $0x100] sm:$0xff] %v437
    %500 = vst [vmem:[#allocation2 + $0x108] sm:$0xff] %v328
    %501 = vst [vmem:[#allocation2 + $0x110] sm:$0xff] %v330
    %502 = vst [vmem:[#allocation2 + $0x118] sm:$0xff] %v440
    %503 = vst [vmem:[#allocation2 + $0x120] sm:$0xff] %v334
    %504 = vst [vmem:[#allocation2 + $0x128] sm:$0xff] %v336
    %505 = vst [vmem:[#allocation2 + $0x130] sm:$0xff] %v445
    %506 = vst [vmem:[#allocation2 + $0x138] sm:$0xff] %v338
    %507 = vst [vmem:[#allocation2 + $0x140] sm:$0xff] %v340
    %508 = vst [vmem:[#allocation2 + $0x148] sm:$0xff] %v448
    %509 = vst [vmem:[#allocation2 + $0x150] sm:$0xff] %v344
    %510 = vst [vmem:[#allocation2 + $0x158] sm:$0xff] %v346
    %511 = vst [vmem:[#allocation2 + $0x160] sm:$0xff] %v453
    %512 = vst [vmem:[#allocation2 + $0x168] sm:$0xff] %v348
    %513 = vst [vmem:[#allocation2 + $0x170] sm:$0xff] %v350
    %514 = vst [vmem:[#allocation2 + $0x178] sm:$0xff] %v456
    %515 = vst [vmem:[#allocation2 + $0x180] sm:$0xff] %v354
    %516 = vst [vmem:[#allocation2 + $0x188] sm:$0xff] %v356
    %517 = vst [vmem:[#allocation2 + $0x190] sm:$0xff] %v461
    %518 = vst [vmem:[#allocation2 + $0x198] sm:$0xff] %v358
    %519 = vst [vmem:[#allocation2 + $0x1a0] sm:$0xff] %v360
    %520 = vst [vmem:[#allocation2 + $0x1a8] sm:$0xff] %v464
    %v521 = vld [vmem:[#allocation8] sm:$0xff]
    %v522 = vld [vmem:[#allocation8 + $0x8] sm:$0xf]
    %v523 = vld [vmem:[#allocation8 + $0xc] sm:$0xff]
    %v524 = vld [vmem:[#allocation8 + $0x14] sm:$0xf]
    %v525 = vld [vmem:[#allocation8 + $0x18] sm:$0xff]
    %v526 = vld [vmem:[#allocation8 + $0x20] sm:$0xf]
    %v527 = vld [vmem:[#allocation8 + $0x24] sm:$0xff]
    %v528 = vld [vmem:[#allocation8 + $0x2c] sm:$0xf]
    %v529 = vld [vmem:[#allocation8 + $0x30] sm:$0xff]
    %v530 = vld [vmem:[#allocation8 + $0x38] sm:$0xf]
    %v531 = vld [vmem:[#allocation8 + $0x3c] sm:$0xff]
    %v532 = vld [vmem:[#allocation8 + $0x44] sm:$0xf]
    %v533 = vld [vmem:[#allocation8 + $0x48] sm:$0xff]
    %v534 = vld [vmem:[#allocation8 + $0x50] sm:$0xf]
    %v535 = vld [vmem:[#allocation8 + $0x54] sm:$0xff]
    %v536 = vld [vmem:[#allocation8 + $0x5c] sm:$0xf]
    %v537 = vld [vmem:[#allocation8 + $0x60] sm:$0xff]
    %v538 = vld [vmem:[#allocation8 + $0x68] sm:$0xf]
    %v539 = vld [vmem:[#allocation8 + $0x6c] sm:$0xff]
    %v540 = vld [vmem:[#allocation8 + $0x74] sm:$0xf]
    %v541 = vld [vmem:[#allocation8 + $0x78] sm:$0xff]
    %v542 = vld [vmem:[#allocation8 + $0x80] sm:$0xf]
    %v543 = vld [vmem:[#allocation8 + $0x84] sm:$0xff]
    %v544 = vld [vmem:[#allocation8 + $0x8c] sm:$0xf]
    %v545 = vld [vmem:[#allocation8 + $0x90] sm:$0xff]
    %v546 = vld [vmem:[#allocation8 + $0x98] sm:$0xf]
    %v547 = vld [vmem:[#allocation8 + $0x9c] sm:$0xff]
    %v548 = vld [vmem:[#allocation8 + $0xa4] sm:$0xf]
    %v549 = vld [vmem:[#allocation8 + $0xa8] sm:$0xff]
    %v550 = vld [vmem:[#allocation8 + $0xb0] sm:$0xf]
    %v551 = vld [vmem:[#allocation8 + $0xb4] sm:$0xff]
    %v552 = vld [vmem:[#allocation8 + $0xbc] sm:$0xf]
    %v553 = vld [vmem:[%s4] sm:$0x1]
    %v555 = vlaneseq
    %v556 = vshrl.u32 %v555, 7
    %v557 = vsub.s32 0, %v556
    %v558 = vrot.slane %v553, %v557
    %s560 = smul.u32 0, 9
    %v561 = vld [vmem:[#allocation12] sm:$0xff]
    %v562 = vld [vmem:[#allocation12 + $0x8] sm:$0xff]
    %v563 = vld [vmem:[#allocation2] sm:$0xff]
    %v564 = vld [vmem:[#allocation2 + $0x8] sm:$0xff]
    %v565 = vld [vmem:[#allocation2 + $0x10] sm:$0xff]
    %v566 = vld [vmem:[#allocation2 + $0x18] sm:$0xff]
    %v567 = vld [vmem:[#allocation2 + $0x20] sm:$0xff]
    %v568 = vld [vmem:[#allocation2 + $0x28] sm:$0xff]
    %v569 = vpack.c.bf16 %v562, %v561
    %v602 = vunpack.c.l.b16 %v521
    %v603 = vunpack.c.h.b16 %v521
    %v604 = vunpack.c.l.b16 %v522
    %v605 = vunpack.c.l.b16 %v523
    %v606 = vunpack.c.h.b16 %v523
    %v607 = vunpack.c.l.b16 %v524
    %v608 = vunpack.c.l.b16 %v525
    %v609 = vunpack.c.h.b16 %v525
    %v610 = vunpack.c.l.b16 %v526
    %v611 = vunpack.c.l.b16 %v527
    %v612 = vunpack.c.h.b16 %v527
    %v613 = vunpack.c.l.b16 %v528
    %v614 = vunpack.c.l.b16 %v529
    %v615 = vunpack.c.h.b16 %v529
    %v616 = vunpack.c.l.b16 %v530
    %v617 = vunpack.c.l.b16 %v531
    %v618 = vunpack.c.h.b16 %v531
    %v619 = vunpack.c.l.b16 %v532
    %v620 = vunpack.c.l.b16 %v533
    %v621 = vunpack.c.h.b16 %v533
    %v622 = vunpack.c.l.b16 %v534
    %v623 = vunpack.c.l.b16 %v535
    %v624 = vunpack.c.h.b16 %v535
    %v625 = vunpack.c.l.b16 %v536
    %v626 = vunpack.c.l.b16 %v537
    %v627 = vunpack.c.h.b16 %v537
    %v628 = vunpack.c.l.b16 %v538
    %v629 = vunpack.c.l.b16 %v539
    %v630 = vunpack.c.h.b16 %v539
    %v631 = vunpack.c.l.b16 %v540
    %v632 = vunpack.c.l.b16 %v541
    %v633 = vunpack.c.h.b16 %v541
    %v634 = vunpack.c.l.b16 %v542
    %v635 = vunpack.c.l.b16 %v543
    %v636 = vunpack.c.h.b16 %v543
    %v637 = vunpack.c.l.b16 %v544
    %v638 = vunpack.c.l.b16 %v545
    %v639 = vunpack.c.h.b16 %v545
    %v640 = vunpack.c.l.b16 %v546
    %v641 = vunpack.c.l.b16 %v547
    %v642 = vunpack.c.h.b16 %v547
    %v643 = vunpack.c.l.b16 %v548
    %v644 = vunpack.c.l.b16 %v549
    %v645 = vunpack.c.h.b16 %v549
    %v646 = vunpack.c.l.b16 %v550
    %v647 = vunpack.c.l.b16 %v551
    %v648 = vunpack.c.h.b16 %v551
    %v649 = vunpack.c.l.b16 %v552
    %v650 = vpack.c.b16 %v605, %v602
    %v651 = vpack.c.b16 %v606, %v603
    %v652 = vpack.c.b16 %v607, %v604
    %v653 = vpack.c.b16 %v611, %v608
    %v654 = vpack.c.b16 %v612, %v609
    %v655 = vpack.c.b16 %v613, %v610
    %v656 = vpack.c.b16 %v617, %v614
    %v657 = vpack.c.b16 %v618, %v615
    %v658 = vpack.c.b16 %v619, %v616
    %v659 = vpack.c.b16 %v623, %v620
    %v660 = vpack.c.b16 %v624, %v621
    %v661 = vpack.c.b16 %v625, %v622
    %v662 = vpack.c.b16 %v629, %v626
    %v663 = vpack.c.b16 %v630, %v627
    %v664 = vpack.c.b16 %v631, %v628
    %v665 = vpack.c.b16 %v635, %v632
    %v666 = vpack.c.b16 %v636, %v633
    %v667 = vpack.c.b16 %v637, %v634
    %v668 = vpack.c.b16 %v641, %v638
    %v669 = vpack.c.b16 %v642, %v639
    %v670 = vpack.c.b16 %v643, %v640
    %v671 = vpack.c.b16 %v647, %v644
    %v672 = vpack.c.b16 %v648, %v645
    %v673 = vpack.c.b16 %v649, %v646
    %698 = vmatprep.subr.bf16.mxu0 %v651
    %699 = vmatpush1.bf16.msra.mxu0 %v650
    %700 = vmatprep.subr.bf16.mxu0 %v654
    %701 = vmatpush1.bf16.msra.mxu0 %v653
    %702 = vmatprep.subr.bf16.mxu0 %v657
    %703 = vmatpush1.bf16.msra.mxu0 %v656
    %704 = vmatprep.subr.bf16.mxu0 %v660
    %705 = vmatpush1.bf16.msra.mxu0 %v659
    %706 = vmatprep.subr.bf16.mxu0 %v663
    %707 = vmatpush1.bf16.msra.mxu0 %v662
    %708 = vmatprep.subr.bf16.mxu0 %v666
    %709 = vmatpush1.bf16.msra.mxu0 %v665
    %710 = vmatprep.subr.bf16.mxu0 %v669
    %711 = vmatpush1.bf16.msra.mxu0 %v668
    %712 = vmatprep.subr.bf16.mxu0 %v672
    %713 = vmatpush1.bf16.msra.mxu0 %v671
    %714 = vmatprep.subr.bf16.mxu0 0
    %715 = vmatpush1.bf16.msra.mxu0 0
    %716 = vmatprep.subr.bf16.mxu0 0
    %717 = vmatpush1.bf16.msra.mxu0 0
    %718 = vmatprep.subr.bf16.mxu0 0
    %719 = vmatpush1.bf16.msra.mxu0 0
    %720 = vmatprep.subr.bf16.mxu0 0
    %721 = vmatpush1.bf16.msra.mxu0 0
    %722 = vmatprep.subr.bf16.mxu0 0
    %723 = vmatpush1.bf16.msra.mxu0 0
    %724 = vmatprep.subr.bf16.mxu0 0
    %725 = vmatpush1.bf16.msra.mxu0 0
    %726 = vmatprep.subr.bf16.mxu0 0
    %727 = vmatpush1.bf16.msra.mxu0 0
    %728 = vmatprep.subr.bf16.mxu0 0
    %729 = vmatpush1.bf16.msra.mxu0 0
    %730 = vmatprep.mubr.bf16.mxu0 0
    %731 = vmatmul.mubr.bf16.gmra.mrb[0].mxu0 %v569
    %v732 = vpop.f32.mrb[0].mxu0
    %v733 = vadd.f32 0.0, %v732
    %v734 = vpop.f32.mrb[0].mxu0
    %v735 = vadd.f32 0.0, %v734
    %v736 = vpop.f32.mrb[0].mxu0
    %v737 = vadd.f32 0.0, %v736
    %v738 = vpop.f32.mrb[0].mxu0
    %v739 = vadd.f32 0.0, %v738
    %740 = vdwg.mxu0
    %741 = vmatprep.subr.bf16.mxu0 0
    %742 = vmatpush1.bf16.msra.mxu0 %v652
    %743 = vmatprep.subr.bf16.mxu0 0
    %744 = vmatpush1.bf16.msra.mxu0 %v655
    %745 = vmatprep.subr.bf16.mxu0 0
    %746 = vmatpush1.bf16.msra.mxu0 %v658
    %747 = vmatprep.subr.bf16.mxu0 0
    %748 = vmatpush1.bf16.msra.mxu0 %v661
    %749 = vmatprep.subr.bf16.mxu0 0
    %750 = vmatpush1.bf16.msra.mxu0 %v664
    %751 = vmatprep.subr.bf16.mxu0 0
    %752 = vmatpush1.bf16.msra.mxu0 %v667
    %753 = vmatprep.subr.bf16.mxu0 0
    %754 = vmatpush1.bf16.msra.mxu0 %v670
    %755 = vmatprep.subr.bf16.mxu0 0
    %756 = vmatpush1.bf16.msra.mxu0 %v673
    %757 = vmatprep.subr.bf16.mxu0 0
    %758 = vmatpush1.bf16.msra.mxu0 0
    %759 = vmatprep.subr.bf16.mxu0 0
    %760 = vmatpush1.bf16.msra.mxu0 0
    %761 = vmatprep.subr.bf16.mxu0 0
    %762 = vmatpush1.bf16.msra.mxu0 0
    %763 = vmatprep.subr.bf16.mxu0 0
    %764 = vmatpush1.bf16.msra.mxu0 0
    %765 = vmatprep.subr.bf16.mxu0 0
    %766 = vmatpush1.bf16.msra.mxu0 0
    %767 = vmatprep.subr.bf16.mxu0 0
    %768 = vmatpush1.bf16.msra.mxu0 0
    %769 = vmatprep.subr.bf16.mxu0 0
    %770 = vmatpush1.bf16.msra.mxu0 0
    %771 = vmatprep.subr.bf16.mxu0 0
    %772 = vmatpush1.bf16.msra.mxu0 0
    %773 = vmatprep.mubr.bf16.mxu0 0
    %774 = vmatmul.mubr.bf16.gmra.mrb[0].mxu0 %v569
    %v775 = vpop.f32.mrb[0].mxu0
    %v776 = vadd.f32 0.0, %v775
    %v777 = vpop.f32.mrb[0].mxu0
    %v778 = vpop.f32.mrb[0].mxu0
    %v779 = vadd.f32 0.0, %v778
    %v780 = vpop.f32.mrb[0].mxu0
    %781 = vdwg.mxu0
    %v782 = vadd.f32 %v563, %v733
    %v783 = vadd.f32 %v566, %v737
    %v784 = vxor.u32 %v782, 2147483648
    %v785 = vxor.u32 %v783, 2147483648
    %v786 = vmul.f32 %v784, 1.442695
    %v787 = vpow.pop %v786
    %v788 = vmul.f32 %v785, 1.442695
    %v789 = vpow.pop %v788
    %v790 = vadd.f32 %v787, 1.0
    %v791 = vadd.f32 %v789, 1.0
    %v792 = vrcp.pop %v790
    %v793 = vmul.f32 1.0, %v792
    %v794 = vrcp.pop %v791
    %v795 = vmul.f32 1.0, %v794
    %v796 = vadd.f32 %v564, %v735
    %v797 = vadd.f32 %v567, %v739
    %v798 = vxor.u32 %v796, 2147483648
    %v799 = vxor.u32 %v797, 2147483648
    %v800 = vmul.f32 %v798, 1.442695
    %v801 = vpow.pop %v800
    %v802 = vmul.f32 %v799, 1.442695
    %v803 = vpow.pop %v802
    %v804 = vadd.f32 %v801, 1.0
    %v805 = vadd.f32 %v803, 1.0
    %v806 = vrcp.pop %v804
    %v807 = vmul.f32 1.0, %v806
    %v808 = vrcp.pop %v805
    %v809 = vmul.f32 1.0, %v808
    %v810 = vadd.f32 %v776, %v558
    %v811 = vadd.f32 %v779, %v558
    %v812 = vmul.f32 %v793, %v810
    %v813 = vmul.f32 %v795, %v811
    %v814 = vadd.f32 %v565, %v812
    %v815 = vadd.f32 %v568, %v813
    %v816 = vtanh.pop %v814
    %v817 = vtanh.pop %v815
    %v818 = vsub.f32 %v561, %v816
    %v819 = vsub.f32 %v562, %v817
    %v820 = vmul.f32 %v807, %v818
    %v821 = vmul.f32 %v809, %v819
    %v822 = vadd.f32 %v816, %v820
    %v823 = vadd.f32 %v817, %v821
    %v824 = vpack.c.bf16 %v823, %v822
    %v826 = vunpack.c.l.b16 %v824
    %v827 = vunpack.c.h.b16 %v824
    %v828 = vpack.c.b16 %v826, %v826
    %v829 = vpack.c.b16 %v827, %v827
    %832 = vst [vmem:[#allocation11] sm:$0xf] %v828
    %833 = vst [vmem:[#allocation11 + $0x4] sm:$0xf] %v829
    %p834 = scmp.lt.s32.totalorder %s560, 9
    %s835 = scalar_select %p834, 1, 0
    %v836 = vstv %s835
    %vm837 = vcmp.eq.s32.totalorder %v836, 1
    %v838 = vsel %vm837, %v822, %v561
    %v839 = vsel %vm837, %v823, %v562
    %s840 = scalar_lea.vmem [#allocation2], 48
    %v841 = vld [vmem:[%s840] sm:$0xff]
    %v842 = vld [vmem:[%s840 + $0x8] sm:$0xff]
    %v843 = vld [vmem:[%s840 + $0x10] sm:$0xff]
    %v844 = vld [vmem:[%s840 + $0x18] sm:$0xff]
    %v845 = vld [vmem:[%s840 + $0x20] sm:$0xff]
    %v846 = vld [vmem:[%s840 + $0x28] sm:$0xff]
    %v847 = vpack.c.bf16 %v839, %v838
    %848 = vmatprep.subr.bf16.mxu0 %v651
    %849 = vmatpush1.bf16.msra.mxu0 %v650
    %850 = vmatprep.subr.bf16.mxu0 %v654
    %851 = vmatpush1.bf16.msra.mxu0 %v653
    %852 = vmatprep.subr.bf16.mxu0 %v657
    %853 = vmatpush1.bf16.msra.mxu0 %v656
    %854 = vmatprep.subr.bf16.mxu0 %v660
    %855 = vmatpush1.bf16.msra.mxu0 %v659
    %856 = vmatprep.subr.bf16.mxu0 %v663
    %857 = vmatpush1.bf16.msra.mxu0 %v662
    %858 = vmatprep.subr.bf16.mxu0 %v666
    %859 = vmatpush1.bf16.msra.mxu0 %v665
    %860 = vmatprep.subr.bf16.mxu0 %v669
    %861 = vmatpush1.bf16.msra.mxu0 %v668
    %862 = vmatprep.subr.bf16.mxu0 %v672
    %863 = vmatpush1.bf16.msra.mxu0 %v671
    %864 = vmatprep.subr.bf16.mxu0 0
    %865 = vmatpush1.bf16.msra.mxu0 0
    %866 = vmatprep.subr.bf16.mxu0 0
    %867 = vmatpush1.bf16.msra.mxu0 0
    %868 = vmatprep.subr.bf16.mxu0 0
    %869 = vmatpush1.bf16.msra.mxu0 0
    %870 = vmatprep.subr.bf16.mxu0 0
    %871 = vmatpush1.bf16.msra.mxu0 0
    %872 = vmatprep.subr.bf16.mxu0 0
    %873 = vmatpush1.bf16.msra.mxu0 0
    %874 = vmatprep.subr.bf16.mxu0 0
    %875 = vmatpush1.bf16.msra.mxu0 0
    %876 = vmatprep.subr.bf16.mxu0 0
    %877 = vmatpush1.bf16.msra.mxu0 0
    %878 = vmatprep.subr.bf16.mxu0 0
    %879 = vmatpush1.bf16.msra.mxu0 0
    %880 = vmatprep.mubr.bf16.mxu0 0
    %881 = vmatmul.mubr.bf16.gmra.mrb[0].mxu0 %v847
    %v882 = vpop.f32.mrb[0].mxu0
    %v883 = vadd.f32 0.0, %v882
    %v884 = vpop.f32.mrb[0].mxu0
    %v885 = vadd.f32 0.0, %v884
    %v886 = vpop.f32.mrb[0].mxu0
    %v887 = vadd.f32 0.0, %v886
    %v888 = vpop.f32.mrb[0].mxu0
    %v889 = vadd.f32 0.0, %v888
    %890 = vdwg.mxu0
    %891 = vmatprep.subr.bf16.mxu0 0
    %892 = vmatpush1.bf16.msra.mxu0 %v652
    %893 = vmatprep.subr.bf16.mxu0 0
    %894 = vmatpush1.bf16.msra.mxu0 %v655
    %895 = vmatprep.subr.bf16.mxu0 0
    %896 = vmatpush1.bf16.msra.mxu0 %v658
    %897 = vmatprep.subr.bf16.mxu0 0
    %898 = vmatpush1.bf16.msra.mxu0 %v661
    %899 = vmatprep.subr.bf16.mxu0 0
    %900 = vmatpush1.bf16.msra.mxu0 %v664
    %901 = vmatprep.subr.bf16.mxu0 0
    %902 = vmatpush1.bf16.msra.mxu0 %v667
    %903 = vmatprep.subr.bf16.mxu0 0
    %904 = vmatpush1.bf16.msra.mxu0 %v670
    %905 = vmatprep.subr.bf16.mxu0 0
    %906 = vmatpush1.bf16.msra.mxu0 %v673
    %907 = vmatprep.subr.bf16.mxu0 0
    %908 = vmatpush1.bf16.msra.mxu0 0
    %909 = vmatprep.subr.bf16.mxu0 0
    %910 = vmatpush1.bf16.msra.mxu0 0
    %911 = vmatprep.subr.bf16.mxu0 0
    %912 = vmatpush1.bf16.msra.mxu0 0
    %913 = vmatprep.subr.bf16.mxu0 0
    %914 = vmatpush1.bf16.msra.mxu0 0
    %915 = vmatprep.subr.bf16.mxu0 0
    %916 = vmatpush1.bf16.msra.mxu0 0
    %917 = vmatprep.subr.bf16.mxu0 0
    %918 = vmatpush1.bf16.msra.mxu0 0
    %919 = vmatprep.subr.bf16.mxu0 0
    %920 = vmatpush1.bf16.msra.mxu0 0
    %921 = vmatprep.subr.bf16.mxu0 0
    %922 = vmatpush1.bf16.msra.mxu0 0
    %923 = vmatprep.mubr.bf16.mxu0 0
    %924 = vmatmul.mubr.bf16.gmra.mrb[0].mxu0 %v847
    %v925 = vpop.f32.mrb[0].mxu0
    %v926 = vadd.f32 0.0, %v925
    %v927 = vpop.f32.mrb[0].mxu0
    %v928 = vpop.f32.mrb[0].mxu0
    %v929 = vadd.f32 0.0, %v928
    %v930 = vpop.f32.mrb[0].mxu0
    %931 = vdwg.mxu0
    %v932 = vadd.f32 %v841, %v883
    %v933 = vadd.f32 %v844, %v887
    %v934 = vxor.u32 %v932, 2147483648
    %v935 = vxor.u32 %v933, 2147483648
    %v936 = vmul.f32 %v934, 1.442695
    %v937 = vpow.pop %v936
    %v938 = vmul.f32 %v935, 1.442695
    %v939 = vpow.pop %v938
    %v940 = vadd.f32 %v937, 1.0
    %v941 = vadd.f32 %v939, 1.0
    %v942 = vrcp.pop %v940
    %v943 = vmul.f32 1.0, %v942
    %v944 = vrcp.pop %v941
    %v945 = vmul.f32 1.0, %v944
    %v946 = vadd.f32 %v842, %v885
    %v947 = vadd.f32 %v845, %v889
    %v948 = vxor.u32 %v946, 2147483648
    %v949 = vxor.u32 %v947, 2147483648
    %v950 = vmul.f32 %v948, 1.442695
    %v951 = vpow.pop %v950
    %v952 = vmul.f32 %v949, 1.442695
    %v953 = vpow.pop %v952
    %v954 = vadd.f32 %v951, 1.0
    %v955 = vadd.f32 %v953, 1.0
    %v956 = vrcp.pop %v954
    %v957 = vmul.f32 1.0, %v956
    %v958 = vrcp.pop %v955
    %v959 = vmul.f32 1.0, %v958
    %v960 = vadd.f32 %v926, %v558
    %v961 = vadd.f32 %v929, %v558
    %v962 = vmul.f32 %v943, %v960
    %v963 = vmul.f32 %v945, %v961
    %v964 = vadd.f32 %v843, %v962
    %v965 = vadd.f32 %v846, %v963
    %v966 = vtanh.pop %v964
    %v967 = vtanh.pop %v965
    %v968 = vsub.f32 %v838, %v966
    %v969 = vsub.f32 %v839, %v967
    %v970 = vmul.f32 %v957, %v968
    %v971 = vmul.f32 %v959, %v969
    %v972 = vadd.f32 %v966, %v970
    %v973 = vadd.f32 %v967, %v971
    %v974 = vpack.c.bf16 %v973, %v972
    %v976 = vunpack.c.l.b16 %v974
    %v977 = vunpack.c.h.b16 %v974
    %v978 = vpack.c.b16 %v976, %v976
    %v979 = vpack.c.b16 %v977, %v977
    %s982 = scalar_lea.vmem [#allocation11], 8
    %983 = vst [vmem:[%s982] sm:$0xf] %v978
    %984 = vst [vmem:[%s982 + $0x4] sm:$0xf] %v979
    %s985 = sadd.s32 %s560, 1
    %p986 = scmp.lt.s32.totalorder %s985, 9
    %s987 = scalar_select %p986, 1, 0
    %v988 = vstv %s987
    %vm989 = vcmp.eq.s32.totalorder %v988, 1
    %v990 = vsel %vm989, %v972, %v838
    %v991 = vsel %vm989, %v973, %v839
    %s992 = scalar_lea.vmem [#allocation2], 96
    %v993 = vld [vmem:[%s992] sm:$0xff]
    %v994 = vld [vmem:[%s992 + $0x8] sm:$0xff]
    %v995 = vld [vmem:[%s992 + $0x10] sm:$0xff]
    %v996 = vld [vmem:[%s992 + $0x18] sm:$0xff]
    %v997 = vld [vmem:[%s992 + $0x20] sm:$0xff]
    %v998 = vld [vmem:[%s992 + $0x28] sm:$0xff]
    %v999 = vpack.c.bf16 %v991, %v990
    %1000 = vmatprep.subr.bf16.mxu0 %v651
    %1001 = vmatpush1.bf16.msra.mxu0 %v650
    %1002 = vmatprep.subr.bf16.mxu0 %v654
    %1003 = vmatpush1.bf16.msra.mxu0 %v653
    %1004 = vmatprep.subr.bf16.mxu0 %v657
    %1005 = vmatpush1.bf16.msra.mxu0 %v656
    %1006 = vmatprep.subr.bf16.mxu0 %v660
    %1007 = vmatpush1.bf16.msra.mxu0 %v659
    %1008 = vmatprep.subr.bf16.mxu0 %v663
    %1009 = vmatpush1.bf16.msra.mxu0 %v662
    %1010 = vmatprep.subr.bf16.mxu0 %v666
    %1011 = vmatpush1.bf16.msra.mxu0 %v665
    %1012 = vmatprep.subr.bf16.mxu0 %v669
    %1013 = vmatpush1.bf16.msra.mxu0 %v668
    %1014 = vmatprep.subr.bf16.mxu0 %v672
    %1015 = vmatpush1.bf16.msra.mxu0 %v671
    %1016 = vmatprep.subr.bf16.mxu0 0
    %1017 = vmatpush1.bf16.msra.mxu0 0
    %1018 = vmatprep.subr.bf16.mxu0 0
    %1019 = vmatpush1.bf16.msra.mxu0 0
    %1020 = vmatprep.subr.bf16.mxu0 0
    %1021 = vmatpush1.bf16.msra.mxu0 0
    %1022 = vmatprep.subr.bf16.mxu0 0
    %1023 = vmatpush1.bf16.msra.mxu0 0
    %1024 = vmatprep.subr.bf16.mxu0 0
    %1025 = vmatpush1.bf16.msra.mxu0 0
    %1026 = vmatprep.subr.bf16.mxu0 0
    %1027 = vmatpush1.bf16.msra.mxu0 0
    %1028 = vmatprep.subr.bf16.mxu0 0
    %1029 = vmatpush1.bf16.msra.mxu0 0
    %1030 = vmatprep.subr.bf16.mxu0 0
    %1031 = vmatpush1.bf16.msra.mxu0 0
    %1032 = vmatprep.mubr.bf16.mxu0 0
    %1033 = vmatmul.mubr.bf16.gmra.mrb[0].mxu0 %v999
    %v1034 = vpop.f32.mrb[0].mxu0
    %v1035 = vadd.f32 0.0, %v1034
    %v1036 = vpop.f32.mrb[0].mxu0
    %v1037 = vadd.f32 0.0, %v1036
    %v1038 = vpop.f32.mrb[0].mxu0
    %v1039 = vadd.f32 0.0, %v1038
    %v1040 = vpop.f32.mrb[0].mxu0
    %v1041 = vadd.f32 0.0, %v1040
    %1042 = vdwg.mxu0
    %1043 = vmatprep.subr.bf16.mxu0 0
    %1044 = vmatpush1.bf16.msra.mxu0 %v652
    %1045 = vmatprep.subr.bf16.mxu0 0
    %1046 = vmatpush1.bf16.msra.mxu0 %v655
    %1047 = vmatprep.subr.bf16.mxu0 0
    %1048 = vmatpush1.bf16.msra.mxu0 %v658
    %1049 = vmatprep.subr.bf16.mxu0 0
    %1050 = vmatpush1.bf16.msra.mxu0 %v661
    %1051 = vmatprep.subr.bf16.mxu0 0
    %1052 = vmatpush1.bf16.msra.mxu0 %v664
    %1053 = vmatprep.subr.bf16.mxu0 0
    %1054 = vmatpush1.bf16.msra.mxu0 %v667
    %1055 = vmatprep.subr.bf16.mxu0 0
    %1056 = vmatpush1.bf16.msra.mxu0 %v670
    %1057 = vmatprep.subr.bf16.mxu0 0
    %1058 = vmatpush1.bf16.msra.mxu0 %v673
    %1059 = vmatprep.subr.bf16.mxu0 0
    %1060 = vmatpush1.bf16.msra.mxu0 0
    %1061 = vmatprep.subr.bf16.mxu0 0
    %1062 = vmatpush1.bf16.msra.mxu0 0
    %1063 = vmatprep.subr.bf16.mxu0 0
    %1064 = vmatpush1.bf16.msra.mxu0 0
    %1065 = vmatprep.subr.bf16.mxu0 0
    %1066 = vmatpush1.bf16.msra.mxu0 0
    %1067 = vmatprep.subr.bf16.mxu0 0
    %1068 = vmatpush1.bf16.msra.mxu0 0
    %1069 = vmatprep.subr.bf16.mxu0 0
    %1070 = vmatpush1.bf16.msra.mxu0 0
    %1071 = vmatprep.subr.bf16.mxu0 0
    %1072 = vmatpush1.bf16.msra.mxu0 0
    %1073 = vmatprep.subr.bf16.mxu0 0
    %1074 = vmatpush1.bf16.msra.mxu0 0
    %1075 = vmatprep.mubr.bf16.mxu0 0
    %1076 = vmatmul.mubr.bf16.gmra.mrb[0].mxu0 %v999
    %v1077 = vpop.f32.mrb[0].mxu0
    %v1078 = vadd.f32 0.0, %v1077
    %v1079 = vpop.f32.mrb[0].mxu0
    %v1080 = vpop.f32.mrb[0].mxu0
    %v1081 = vadd.f32 0.0, %v1080
    %v1082 = vpop.f32.mrb[0].mxu0
    %1083 = vdwg.mxu0
    %v1084 = vadd.f32 %v993, %v1035
    %v1085 = vadd.f32 %v996, %v1039
    %v1086 = vxor.u32 %v1084, 2147483648
    %v1087 = vxor.u32 %v1085, 2147483648
    %v1088 = vmul.f32 %v1086, 1.442695
    %v1089 = vpow.pop %v1088
    %v1090 = vmul.f32 %v1087, 1.442695
    %v1091 = vpow.pop %v1090
    %v1092 = vadd.f32 %v1089, 1.0
    %v1093 = vadd.f32 %v1091, 1.0
    %v1094 = vrcp.pop %v1092
    %v1095 = vmul.f32 1.0, %v1094
    %v1096 = vrcp.pop %v1093
    %v1097 = vmul.f32 1.0, %v1096
    %v1098 = vadd.f32 %v994, %v1037
    %v1099 = vadd.f32 %v997, %v1041
    %v1100 = vxor.u32 %v1098, 2147483648
    %v1101 = vxor.u32 %v1099, 2147483648
    %v1102 = vmul.f32 %v1100, 1.442695
    %v1103 = vpow.pop %v1102
    %v1104 = vmul.f32 %v1101, 1.442695
    %v1105 = vpow.pop %v1104
    %v1106 = vadd.f32 %v1103, 1.0
    %v1107 = vadd.f32 %v1105, 1.0
    %v1108 = vrcp.pop %v1106
    %v1109 = vmul.f32 1.0, %v1108
    %v1110 = vrcp.pop %v1107
    %v1111 = vmul.f32 1.0, %v1110
    %v1112 = vadd.f32 %v1078, %v558
    %v1113 = vadd.f32 %v1081, %v558
    %v1114 = vmul.f32 %v1095, %v1112
    %v1115 = vmul.f32 %v1097, %v1113
    %v1116 = vadd.f32 %v995, %v1114
    %v1117 = vadd.f32 %v998, %v1115
    %v1118 = vtanh.pop %v1116
    %v1119 = vtanh.pop %v1117
    %v1120 = vsub.f32 %v990, %v1118
    %v1121 = vsub.f32 %v991, %v1119
    %v1122 = vmul.f32 %v1109, %v1120
    %v1123 = vmul.f32 %v1111, %v1121
    %v1124 = vadd.f32 %v1118, %v1122
    %v1125 = vadd.f32 %v1119, %v1123
    %v1126 = vpack.c.bf16 %v1125, %v1124
    %v1128 = vunpack.c.l.b16 %v1126
    %v1129 = vunpack.c.h.b16 %v1126
    %v1130 = vpack.c.b16 %v1128, %v1128
    %v1131 = vpack.c.b16 %v1129, %v1129
    %s1134 = scalar_lea.vmem [#allocation11], 16
    %1135 = vst [vmem:[%s1134] sm:$0xf] %v1130
    %1136 = vst [vmem:[%s1134 + $0x4] sm:$0xf] %v1131
    %s1137 = sadd.s32 %s560, 2
    %p1138 = scmp.lt.s32.totalorder %s1137, 9
    %s1139 = scalar_select %p1138, 1, 0
    %v1140 = vstv %s1139
    %vm1141 = vcmp.eq.s32.totalorder %v1140, 1
    %v1142 = vsel %vm1141, %v1124, %v990
    %v1143 = vsel %vm1141, %v1125, %v991
    %s1144 = scalar_lea.vmem [#allocation2], 144
    %v1145 = vld [vmem:[%s1144] sm:$0xff]
    %v1146 = vld [vmem:[%s1144 + $0x8] sm:$0xff]
    %v1147 = vld [vmem:[%s1144 + $0x10] sm:$0xff]
    %v1148 = vld [vmem:[%s1144 + $0x18] sm:$0xff]
    %v1149 = vld [vmem:[%s1144 + $0x20] sm:$0xff]
    %v1150 = vld [vmem:[%s1144 + $0x28] sm:$0xff]
    %v1151 = vpack.c.bf16 %v1143, %v1142
    %1152 = vmatprep.subr.bf16.mxu0 %v651
    %1153 = vmatpush1.bf16.msra.mxu0 %v650
    %1154 = vmatprep.subr.bf16.mxu0 %v654
    %1155 = vmatpush1.bf16.msra.mxu0 %v653
    %1156 = vmatprep.subr.bf16.mxu0 %v657
    %1157 = vmatpush1.bf16.msra.mxu0 %v656
    %1158 = vmatprep.subr.bf16.mxu0 %v660
    %1159 = vmatpush1.bf16.msra.mxu0 %v659
    %1160 = vmatprep.subr.bf16.mxu0 %v663
    %1161 = vmatpush1.bf16.msra.mxu0 %v662
    %1162 = vmatprep.subr.bf16.mxu0 %v666
    %1163 = vmatpush1.bf16.msra.mxu0 %v665
    %1164 = vmatprep.subr.bf16.mxu0 %v669
    %1165 = vmatpush1.bf16.msra.mxu0 %v668
    %1166 = vmatprep.subr.bf16.mxu0 %v672
    %1167 = vmatpush1.bf16.msra.mxu0 %v671
    %1168 = vmatprep.subr.bf16.mxu0 0
    %1169 = vmatpush1.bf16.msra.mxu0 0
    %1170 = vmatprep.subr.bf16.mxu0 0
    %1171 = vmatpush1.bf16.msra.mxu0 0
    %1172 = vmatprep.subr.bf16.mxu0 0
    %1173 = vmatpush1.bf16.msra.mxu0 0
    %1174 = vmatprep.subr.bf16.mxu0 0
    %1175 = vmatpush1.bf16.msra.mxu0 0
    %1176 = vmatprep.subr.bf16.mxu0 0
    %1177 = vmatpush1.bf16.msra.mxu0 0
    %1178 = vmatprep.subr.bf16.mxu0 0
    %1179 = vmatpush1.bf16.msra.mxu0 0
    %1180 = vmatprep.subr.bf16.mxu0 0
    %1181 = vmatpush1.bf16.msra.mxu0 0
    %1182 = vmatprep.subr.bf16.mxu0 0
    %1183 = vmatpush1.bf16.msra.mxu0 0
    %1184 = vmatprep.mubr.bf16.mxu0 0
    %1185 = vmatmul.mubr.bf16.gmra.mrb[0].mxu0 %v1151
    %v1186 = vpop.f32.mrb[0].mxu0
    %v1187 = vadd.f32 0.0, %v1186
    %v1188 = vpop.f32.mrb[0].mxu0
    %v1189 = vadd.f32 0.0, %v1188
    %v1190 = vpop.f32.mrb[0].mxu0
    %v1191 = vadd.f32 0.0, %v1190
    %v1192 = vpop.f32.mrb[0].mxu0
    %v1193 = vadd.f32 0.0, %v1192
    %1194 = vdwg.mxu0
    %1195 = vmatprep.subr.bf16.mxu0 0
    %1196 = vmatpush1.bf16.msra.mxu0 %v652
    %1197 = vmatprep.subr.bf16.mxu0 0
    %1198 = vmatpush1.bf16.msra.mxu0 %v655
    %1199 = vmatprep.subr.bf16.mxu0 0
    %1200 = vmatpush1.bf16.msra.mxu0 %v658
    %1201 = vmatprep.subr.bf16.mxu0 0
    %1202 = vmatpush1.bf16.msra.mxu0 %v661
    %1203 = vmatprep.subr.bf16.mxu0 0
    %1204 = vmatpush1.bf16.msra.mxu0 %v664
    %1205 = vmatprep.subr.bf16.mxu0 0
    %1206 = vmatpush1.bf16.msra.mxu0 %v667
    %1207 = vmatprep.subr.bf16.mxu0 0
    %1208 = vmatpush1.bf16.msra.mxu0 %v670
    %1209 = vmatprep.subr.bf16.mxu0 0
    %1210 = vmatpush1.bf16.msra.mxu0 %v673
    %1211 = vmatprep.subr.bf16.mxu0 0
    %1212 = vmatpush1.bf16.msra.mxu0 0
    %1213 = vmatprep.subr.bf16.mxu0 0
    %1214 = vmatpush1.bf16.msra.mxu0 0
    %1215 = vmatprep.subr.bf16.mxu0 0
    %1216 = vmatpush1.bf16.msra.mxu0 0
    %1217 = vmatprep.subr.bf16.mxu0 0
    %1218 = vmatpush1.bf16.msra.mxu0 0
    %1219 = vmatprep.subr.bf16.mxu0 0
    %1220 = vmatpush1.bf16.msra.mxu0 0
    %1221 = vmatprep.subr.bf16.mxu0 0
    %1222 = vmatpush1.bf16.msra.mxu0 0
    %1223 = vmatprep.subr.bf16.mxu0 0
    %1224 = vmatpush1.bf16.msra.mxu0 0
    %1225 = vmatprep.subr.bf16.mxu0 0
    %1226 = vmatpush1.bf16.msra.mxu0 0
    %1227 = vmatprep.mubr.bf16.mxu0 0
    %1228 = vmatmul.mubr.bf16.gmra.mrb[0].mxu0 %v1151
    %v1229 = vpop.f32.mrb[0].mxu0
    %v1230 = vadd.f32 0.0, %v1229
    %v1231 = vpop.f32.mrb[0].mxu0
    %v1232 = vpop.f32.mrb[0].mxu0
    %v1233 = vadd.f32 0.0, %v1232
    %v1234 = vpop.f32.mrb[0].mxu0
    %1235 = vdwg.mxu0
    %v1236 = vadd.f32 %v1145, %v1187
    %v1237 = vadd.f32 %v1148, %v1191
    %v1238 = vxor.u32 %v1236, 2147483648
    %v1239 = vxor.u32 %v1237, 2147483648
    %v1240 = vmul.f32 %v1238, 1.442695
    %v1241 = vpow.pop %v1240
    %v1242 = vmul.f32 %v1239, 1.442695
    %v1243 = vpow.pop %v1242
    %v1244 = vadd.f32 %v1241, 1.0
    %v1245 = vadd.f32 %v1243, 1.0
    %v1246 = vrcp.pop %v1244
    %v1247 = vmul.f32 1.0, %v1246
    %v1248 = vrcp.pop %v1245
    %v1249 = vmul.f32 1.0, %v1248
    %v1250 = vadd.f32 %v1146, %v1189
    %v1251 = vadd.f32 %v1149, %v1193
    %v1252 = vxor.u32 %v1250, 2147483648
    %v1253 = vxor.u32 %v1251, 2147483648
    %v1254 = vmul.f32 %v1252, 1.442695
    %v1255 = vpow.pop %v1254
    %v1256 = vmul.f32 %v1253, 1.442695
    %v1257 = vpow.pop %v1256
    %v1258 = vadd.f32 %v1255, 1.0
    %v1259 = vadd.f32 %v1257, 1.0
    %v1260 = vrcp.pop %v1258
    %v1261 = vmul.f32 1.0, %v1260
    %v1262 = vrcp.pop %v1259
    %v1263 = vmul.f32 1.0, %v1262
    %v1264 = vadd.f32 %v1230, %v558
    %v1265 = vadd.f32 %v1233, %v558
    %v1266 = vmul.f32 %v1247, %v1264
    %v1267 = vmul.f32 %v1249, %v1265
    %v1268 = vadd.f32 %v1147, %v1266
    %v1269 = vadd.f32 %v1150, %v1267
    %v1270 = vtanh.pop %v1268
    %v1271 = vtanh.pop %v1269
    %v1272 = vsub.f32 %v1142, %v1270
    %v1273 = vsub.f32 %v1143, %v1271
    %v1274 = vmul.f32 %v1261, %v1272
    %v1275 = vmul.f32 %v1263, %v1273
    %v1276 = vadd.f32 %v1270, %v1274
    %v1277 = vadd.f32 %v1271, %v1275
    %v1278 = vpack.c.bf16 %v1277, %v1276
    %v1280 = vunpack.c.l.b16 %v1278
    %v1281 = vunpack.c.h.b16 %v1278
    %v1282 = vpack.c.b16 %v1280, %v1280
    %v1283 = vpack.c.b16 %v1281, %v1281
    %s1286 = scalar_lea.vmem [#allocation11], 24
    %1287 = vst [vmem:[%s1286] sm:$0xf] %v1282
    %1288 = vst [vmem:[%s1286 + $0x4] sm:$0xf] %v1283
    %s1289 = sadd.s32 %s560, 3
    %p1290 = scmp.lt.s32.totalorder %s1289, 9
    %s1291 = scalar_select %p1290, 1, 0
    %v1292 = vstv %s1291
    %vm1293 = vcmp.eq.s32.totalorder %v1292, 1
    %v1294 = vsel %vm1293, %v1276, %v1142
    %v1295 = vsel %vm1293, %v1277, %v1143
    %s1296 = scalar_lea.vmem [#allocation2], 192
    %v1297 = vld [vmem:[%s1296] sm:$0xff]
    %v1298 = vld [vmem:[%s1296 + $0x8] sm:$0xff]
    %v1299 = vld [vmem:[%s1296 + $0x10] sm:$0xff]
    %v1300 = vld [vmem:[%s1296 + $0x18] sm:$0xff]
    %v1301 = vld [vmem:[%s1296 + $0x20] sm:$0xff]
    %v1302 = vld [vmem:[%s1296 + $0x28] sm:$0xff]
    %v1303 = vpack.c.bf16 %v1295, %v1294
    %1304 = vmatprep.subr.bf16.mxu0 %v651
    %1305 = vmatpush1.bf16.msra.mxu0 %v650
    %1306 = vmatprep.subr.bf16.mxu0 %v654
    %1307 = vmatpush1.bf16.msra.mxu0 %v653
    %1308 = vmatprep.subr.bf16.mxu0 %v657
    %1309 = vmatpush1.bf16.msra.mxu0 %v656
    %1310 = vmatprep.subr.bf16.mxu0 %v660
    %1311 = vmatpush1.bf16.msra.mxu0 %v659
    %1312 = vmatprep.subr.bf16.mxu0 %v663
    %1313 = vmatpush1.bf16.msra.mxu0 %v662
    %1314 = vmatprep.subr.bf16.mxu0 %v666
    %1315 = vmatpush1.bf16.msra.mxu0 %v665
    %1316 = vmatprep.subr.bf16.mxu0 %v669
    %1317 = vmatpush1.bf16.msra.mxu0 %v668
    %1318 = vmatprep.subr.bf16.mxu0 %v672
    %1319 = vmatpush1.bf16.msra.mxu0 %v671
    %1320 = vmatprep.subr.bf16.mxu0 0
    %1321 = vmatpush1.bf16.msra.mxu0 0
    %1322 = vmatprep.subr.bf16.mxu0 0
    %1323 = vmatpush1.bf16.msra.mxu0 0
    %1324 = vmatprep.subr.bf16.mxu0 0
    %1325 = vmatpush1.bf16.msra.mxu0 0
    %1326 = vmatprep.subr.bf16.mxu0 0
    %1327 = vmatpush1.bf16.msra.mxu0 0
    %1328 = vmatprep.subr.bf16.mxu0 0
    %1329 = vmatpush1.bf16.msra.mxu0 0
    %1330 = vmatprep.subr.bf16.mxu0 0
    %1331 = vmatpush1.bf16.msra.mxu0 0
    %1332 = vmatprep.subr.bf16.mxu0 0
    %1333 = vmatpush1.bf16.msra.mxu0 0
    %1334 = vmatprep.subr.bf16.mxu0 0
    %1335 = vmatpush1.bf16.msra.mxu0 0
    %1336 = vmatprep.mubr.bf16.mxu0 0
    %1337 = vmatmul.mubr.bf16.gmra.mrb[0].mxu0 %v1303
    %v1338 = vpop.f32.mrb[0].mxu0
    %v1339 = vadd.f32 0.0, %v1338
    %v1340 = vpop.f32.mrb[0].mxu0
    %v1341 = vadd.f32 0.0, %v1340
    %v1342 = vpop.f32.mrb[0].mxu0
    %v1343 = vadd.f32 0.0, %v1342
    %v1344 = vpop.f32.mrb[0].mxu0
    %v1345 = vadd.f32 0.0, %v1344
    %1346 = vdwg.mxu0
    %1347 = vmatprep.subr.bf16.mxu0 0
    %1348 = vmatpush1.bf16.msra.mxu0 %v652
    %1349 = vmatprep.subr.bf16.mxu0 0
    %1350 = vmatpush1.bf16.msra.mxu0 %v655
    %1351 = vmatprep.subr.bf16.mxu0 0
    %1352 = vmatpush1.bf16.msra.mxu0 %v658
    %1353 = vmatprep.subr.bf16.mxu0 0
    %1354 = vmatpush1.bf16.msra.mxu0 %v661
    %1355 = vmatprep.subr.bf16.mxu0 0
    %1356 = vmatpush1.bf16.msra.mxu0 %v664
    %1357 = vmatprep.subr.bf16.mxu0 0
    %1358 = vmatpush1.bf16.msra.mxu0 %v667
    %1359 = vmatprep.subr.bf16.mxu0 0
    %1360 = vmatpush1.bf16.msra.mxu0 %v670
    %1361 = vmatprep.subr.bf16.mxu0 0
    %1362 = vmatpush1.bf16.msra.mxu0 %v673
    %1363 = vmatprep.subr.bf16.mxu0 0
    %1364 = vmatpush1.bf16.msra.mxu0 0
    %1365 = vmatprep.subr.bf16.mxu0 0
    %1366 = vmatpush1.bf16.msra.mxu0 0
    %1367 = vmatprep.subr.bf16.mxu0 0
    %1368 = vmatpush1.bf16.msra.mxu0 0
    %1369 = vmatprep.subr.bf16.mxu0 0
    %1370 = vmatpush1.bf16.msra.mxu0 0
    %1371 = vmatprep.subr.bf16.mxu0 0
    %1372 = vmatpush1.bf16.msra.mxu0 0
    %1373 = vmatprep.subr.bf16.mxu0 0
    %1374 = vmatpush1.bf16.msra.mxu0 0
    %1375 = vmatprep.subr.bf16.mxu0 0
    %1376 = vmatpush1.bf16.msra.mxu0 0
    %1377 = vmatprep.subr.bf16.mxu0 0
    %1378 = vmatpush1.bf16.msra.mxu0 0
    %1379 = vmatprep.mubr.bf16.mxu0 0
    %1380 = vmatmul.mubr.bf16.gmra.mrb[0].mxu0 %v1303
    %v1381 = vpop.f32.mrb[0].mxu0
    %v1382 = vadd.f32 0.0, %v1381
    %v1383 = vpop.f32.mrb[0].mxu0
    %v1384 = vpop.f32.mrb[0].mxu0
    %v1385 = vadd.f32 0.0, %v1384
    %v1386 = vpop.f32.mrb[0].mxu0
    %1387 = vdwg.mxu0
    %v1388 = vadd.f32 %v1297, %v1339
    %v1389 = vadd.f32 %v1300, %v1343
    %v1390 = vxor.u32 %v1388, 2147483648
    %v1391 = vxor.u32 %v1389, 2147483648
    %v1392 = vmul.f32 %v1390, 1.442695
    %v1393 = vpow.pop %v1392
    %v1394 = vmul.f32 %v1391, 1.442695
    %v1395 = vpow.pop %v1394
    %v1396 = vadd.f32 %v1393, 1.0
    %v1397 = vadd.f32 %v1395, 1.0
    %v1398 = vrcp.pop %v1396
    %v1399 = vmul.f32 1.0, %v1398
    %v1400 = vrcp.pop %v1397
    %v1401 = vmul.f32 1.0, %v1400
    %v1402 = vadd.f32 %v1298, %v1341
    %v1403 = vadd.f32 %v1301, %v1345
    %v1404 = vxor.u32 %v1402, 2147483648
    %v1405 = vxor.u32 %v1403, 2147483648
    %v1406 = vmul.f32 %v1404, 1.442695
    %v1407 = vpow.pop %v1406
    %v1408 = vmul.f32 %v1405, 1.442695
    %v1409 = vpow.pop %v1408
    %v1410 = vadd.f32 %v1407, 1.0
    %v1411 = vadd.f32 %v1409, 1.0
    %v1412 = vrcp.pop %v1410
    %v1413 = vmul.f32 1.0, %v1412
    %v1414 = vrcp.pop %v1411
    %v1415 = vmul.f32 1.0, %v1414
    %v1416 = vadd.f32 %v1382, %v558
    %v1417 = vadd.f32 %v1385, %v558
    %v1418 = vmul.f32 %v1399, %v1416
    %v1419 = vmul.f32 %v1401, %v1417
    %v1420 = vadd.f32 %v1299, %v1418
    %v1421 = vadd.f32 %v1302, %v1419
    %v1422 = vtanh.pop %v1420
    %v1423 = vtanh.pop %v1421
    %v1424 = vsub.f32 %v1294, %v1422
    %v1425 = vsub.f32 %v1295, %v1423
    %v1426 = vmul.f32 %v1413, %v1424
    %v1427 = vmul.f32 %v1415, %v1425
    %v1428 = vadd.f32 %v1422, %v1426
    %v1429 = vadd.f32 %v1423, %v1427
    %v1430 = vpack.c.bf16 %v1429, %v1428
    %v1432 = vunpack.c.l.b16 %v1430
    %v1433 = vunpack.c.h.b16 %v1430
    %v1434 = vpack.c.b16 %v1432, %v1432
    %v1435 = vpack.c.b16 %v1433, %v1433
    %s1438 = scalar_lea.vmem [#allocation11], 32
    %1439 = vst [vmem:[%s1438] sm:$0xf] %v1434
    %1440 = vst [vmem:[%s1438 + $0x4] sm:$0xf] %v1435
    %s1441 = sadd.s32 %s560, 4
    %p1442 = scmp.lt.s32.totalorder %s1441, 9
    %s1443 = scalar_select %p1442, 1, 0
    %v1444 = vstv %s1443
    %vm1445 = vcmp.eq.s32.totalorder %v1444, 1
    %v1446 = vsel %vm1445, %v1428, %v1294
    %v1447 = vsel %vm1445, %v1429, %v1295
    %s1448 = scalar_lea.vmem [#allocation2], 240
    %v1449 = vld [vmem:[%s1448] sm:$0xff]
    %v1450 = vld [vmem:[%s1448 + $0x8] sm:$0xff]
    %v1451 = vld [vmem:[%s1448 + $0x10] sm:$0xff]
    %v1452 = vld [vmem:[%s1448 + $0x18] sm:$0xff]
    %v1453 = vld [vmem:[%s1448 + $0x20] sm:$0xff]
    %v1454 = vld [vmem:[%s1448 + $0x28] sm:$0xff]
    %v1455 = vpack.c.bf16 %v1447, %v1446
    %1456 = vmatprep.subr.bf16.mxu0 %v651
    %1457 = vmatpush1.bf16.msra.mxu0 %v650
    %1458 = vmatprep.subr.bf16.mxu0 %v654
    %1459 = vmatpush1.bf16.msra.mxu0 %v653
    %1460 = vmatprep.subr.bf16.mxu0 %v657
    %1461 = vmatpush1.bf16.msra.mxu0 %v656
    %1462 = vmatprep.subr.bf16.mxu0 %v660
    %1463 = vmatpush1.bf16.msra.mxu0 %v659
    %1464 = vmatprep.subr.bf16.mxu0 %v663
    %1465 = vmatpush1.bf16.msra.mxu0 %v662
    %1466 = vmatprep.subr.bf16.mxu0 %v666
    %1467 = vmatpush1.bf16.msra.mxu0 %v665
    %1468 = vmatprep.subr.bf16.mxu0 %v669
    %1469 = vmatpush1.bf16.msra.mxu0 %v668
    %1470 = vmatprep.subr.bf16.mxu0 %v672
    %1471 = vmatpush1.bf16.msra.mxu0 %v671
    %1472 = vmatprep.subr.bf16.mxu0 0
    %1473 = vmatpush1.bf16.msra.mxu0 0
    %1474 = vmatprep.subr.bf16.mxu0 0
    %1475 = vmatpush1.bf16.msra.mxu0 0
    %1476 = vmatprep.subr.bf16.mxu0 0
    %1477 = vmatpush1.bf16.msra.mxu0 0
    %1478 = vmatprep.subr.bf16.mxu0 0
    %1479 = vmatpush1.bf16.msra.mxu0 0
    %1480 = vmatprep.subr.bf16.mxu0 0
    %1481 = vmatpush1.bf16.msra.mxu0 0
    %1482 = vmatprep.subr.bf16.mxu0 0
    %1483 = vmatpush1.bf16.msra.mxu0 0
    %1484 = vmatprep.subr.bf16.mxu0 0
    %1485 = vmatpush1.bf16.msra.mxu0 0
    %1486 = vmatprep.subr.bf16.mxu0 0
    %1487 = vmatpush1.bf16.msra.mxu0 0
    %1488 = vmatprep.mubr.bf16.mxu0 0
    %1489 = vmatmul.mubr.bf16.gmra.mrb[0].mxu0 %v1455
    %v1490 = vpop.f32.mrb[0].mxu0
    %v1491 = vadd.f32 0.0, %v1490
    %v1492 = vpop.f32.mrb[0].mxu0
    %v1493 = vadd.f32 0.0, %v1492
    %v1494 = vpop.f32.mrb[0].mxu0
    %v1495 = vadd.f32 0.0, %v1494
    %v1496 = vpop.f32.mrb[0].mxu0
    %v1497 = vadd.f32 0.0, %v1496
    %1498 = vdwg.mxu0
    %1499 = vmatprep.subr.bf16.mxu0 0
    %1500 = vmatpush1.bf16.msra.mxu0 %v652
    %1501 = vmatprep.subr.bf16.mxu0 0
    %1502 = vmatpush1.bf16.msra.mxu0 %v655
    %1503 = vmatprep.subr.bf16.mxu0 0
    %1504 = vmatpush1.bf16.msra.mxu0 %v658
    %1505 = vmatprep.subr.bf16.mxu0 0
    %1506 = vmatpush1.bf16.msra.mxu0 %v661
    %1507 = vmatprep.subr.bf16.mxu0 0
    %1508 = vmatpush1.bf16.msra.mxu0 %v664
    %1509 = vmatprep.subr.bf16.mxu0 0
    %1510 = vmatpush1.bf16.msra.mxu0 %v667
    %1511 = vmatprep.subr.bf16.mxu0 0
    %1512 = vmatpush1.bf16.msra.mxu0 %v670
    %1513 = vmatprep.subr.bf16.mxu0 0
    %1514 = vmatpush1.bf16.msra.mxu0 %v673
    %1515 = vmatprep.subr.bf16.mxu0 0
    %1516 = vmatpush1.bf16.msra.mxu0 0
    %1517 = vmatprep.subr.bf16.mxu0 0
    %1518 = vmatpush1.bf16.msra.mxu0 0
    %1519 = vmatprep.subr.bf16.mxu0 0
    %1520 = vmatpush1.bf16.msra.mxu0 0
    %1521 = vmatprep.subr.bf16.mxu0 0
    %1522 = vmatpush1.bf16.msra.mxu0 0
    %1523 = vmatprep.subr.bf16.mxu0 0
    %1524 = vmatpush1.bf16.msra.mxu0 0
    %1525 = vmatprep.subr.bf16.mxu0 0
    %1526 = vmatpush1.bf16.msra.mxu0 0
    %1527 = vmatprep.subr.bf16.mxu0 0
    %1528 = vmatpush1.bf16.msra.mxu0 0
    %1529 = vmatprep.subr.bf16.mxu0 0
    %1530 = vmatpush1.bf16.msra.mxu0 0
    %1531 = vmatprep.mubr.bf16.mxu0 0
    %1532 = vmatmul.mubr.bf16.gmra.mrb[0].mxu0 %v1455
    %v1533 = vpop.f32.mrb[0].mxu0
    %v1534 = vadd.f32 0.0, %v1533
    %v1535 = vpop.f32.mrb[0].mxu0
    %v1536 = vpop.f32.mrb[0].mxu0
    %v1537 = vadd.f32 0.0, %v1536
    %v1538 = vpop.f32.mrb[0].mxu0
    %1539 = vdwg.mxu0
    %v1540 = vadd.f32 %v1449, %v1491
    %v1541 = vadd.f32 %v1452, %v1495
    %v1542 = vxor.u32 %v1540, 2147483648
    %v1543 = vxor.u32 %v1541, 2147483648
    %v1544 = vmul.f32 %v1542, 1.442695
    %v1545 = vpow.pop %v1544
    %v1546 = vmul.f32 %v1543, 1.442695
    %v1547 = vpow.pop %v1546
    %v1548 = vadd.f32 %v1545, 1.0
    %v1549 = vadd.f32 %v1547, 1.0
    %v1550 = vrcp.pop %v1548
    %v1551 = vmul.f32 1.0, %v1550
    %v1552 = vrcp.pop %v1549
    %v1553 = vmul.f32 1.0, %v1552
    %v1554 = vadd.f32 %v1450, %v1493
    %v1555 = vadd.f32 %v1453, %v1497
    %v1556 = vxor.u32 %v1554, 2147483648
    %v1557 = vxor.u32 %v1555, 2147483648
    %v1558 = vmul.f32 %v1556, 1.442695
    %v1559 = vpow.pop %v1558
    %v1560 = vmul.f32 %v1557, 1.442695
    %v1561 = vpow.pop %v1560
    %v1562 = vadd.f32 %v1559, 1.0
    %v1563 = vadd.f32 %v1561, 1.0
    %v1564 = vrcp.pop %v1562
    %v1565 = vmul.f32 1.0, %v1564
    %v1566 = vrcp.pop %v1563
    %v1567 = vmul.f32 1.0, %v1566
    %v1568 = vadd.f32 %v1534, %v558
    %v1569 = vadd.f32 %v1537, %v558
    %v1570 = vmul.f32 %v1551, %v1568
    %v1571 = vmul.f32 %v1553, %v1569
    %v1572 = vadd.f32 %v1451, %v1570
    %v1573 = vadd.f32 %v1454, %v1571
    %v1574 = vtanh.pop %v1572
    %v1575 = vtanh.pop %v1573
    %v1576 = vsub.f32 %v1446, %v1574
    %v1577 = vsub.f32 %v1447, %v1575
    %v1578 = vmul.f32 %v1565, %v1576
    %v1579 = vmul.f32 %v1567, %v1577
    %v1580 = vadd.f32 %v1574, %v1578
    %v1581 = vadd.f32 %v1575, %v1579
    %v1582 = vpack.c.bf16 %v1581, %v1580
    %v1584 = vunpack.c.l.b16 %v1582
    %v1585 = vunpack.c.h.b16 %v1582
    %v1586 = vpack.c.b16 %v1584, %v1584
    %v1587 = vpack.c.b16 %v1585, %v1585
    %s1590 = scalar_lea.vmem [#allocation11], 40
    %1591 = vst [vmem:[%s1590] sm:$0xf] %v1586
    %1592 = vst [vmem:[%s1590 + $0x4] sm:$0xf] %v1587
    %s1593 = sadd.s32 %s560, 5
    %p1594 = scmp.lt.s32.totalorder %s1593, 9
    %s1595 = scalar_select %p1594, 1, 0
    %v1596 = vstv %s1595
    %vm1597 = vcmp.eq.s32.totalorder %v1596, 1
    %v1598 = vsel %vm1597, %v1580, %v1446
    %v1599 = vsel %vm1597, %v1581, %v1447
    %s1600 = scalar_lea.vmem [#allocation2], 288
    %v1601 = vld [vmem:[%s1600] sm:$0xff]
    %v1602 = vld [vmem:[%s1600 + $0x8] sm:$0xff]
    %v1603 = vld [vmem:[%s1600 + $0x10] sm:$0xff]
    %v1604 = vld [vmem:[%s1600 + $0x18] sm:$0xff]
    %v1605 = vld [vmem:[%s1600 + $0x20] sm:$0xff]
    %v1606 = vld [vmem:[%s1600 + $0x28] sm:$0xff]
    %v1607 = vpack.c.bf16 %v1599, %v1598
    %1608 = vmatprep.subr.bf16.mxu0 %v651
    %1609 = vmatpush1.bf16.msra.mxu0 %v650
    %1610 = vmatprep.subr.bf16.mxu0 %v654
    %1611 = vmatpush1.bf16.msra.mxu0 %v653
    %1612 = vmatprep.subr.bf16.mxu0 %v657
    %1613 = vmatpush1.bf16.msra.mxu0 %v656
    %1614 = vmatprep.subr.bf16.mxu0 %v660
    %1615 = vmatpush1.bf16.msra.mxu0 %v659
    %1616 = vmatprep.subr.bf16.mxu0 %v663
    %1617 = vmatpush1.bf16.msra.mxu0 %v662
    %1618 = vmatprep.subr.bf16.mxu0 %v666
    %1619 = vmatpush1.bf16.msra.mxu0 %v665
    %1620 = vmatprep.subr.bf16.mxu0 %v669
    %1621 = vmatpush1.bf16.msra.mxu0 %v668
    %1622 = vmatprep.subr.bf16.mxu0 %v672
    %1623 = vmatpush1.bf16.msra.mxu0 %v671
    %1624 = vmatprep.subr.bf16.mxu0 0
    %1625 = vmatpush1.bf16.msra.mxu0 0
    %1626 = vmatprep.subr.bf16.mxu0 0
    %1627 = vmatpush1.bf16.msra.mxu0 0
    %1628 = vmatprep.subr.bf16.mxu0 0
    %1629 = vmatpush1.bf16.msra.mxu0 0
    %1630 = vmatprep.subr.bf16.mxu0 0
    %1631 = vmatpush1.bf16.msra.mxu0 0
    %1632 = vmatprep.subr.bf16.mxu0 0
    %1633 = vmatpush1.bf16.msra.mxu0 0
    %1634 = vmatprep.subr.bf16.mxu0 0
    %1635 = vmatpush1.bf16.msra.mxu0 0
    %1636 = vmatprep.subr.bf16.mxu0 0
    %1637 = vmatpush1.bf16.msra.mxu0 0
    %1638 = vmatprep.subr.bf16.mxu0 0
    %1639 = vmatpush1.bf16.msra.mxu0 0
    %1640 = vmatprep.mubr.bf16.mxu0 0
    %1641 = vmatmul.mubr.bf16.gmra.mrb[0].mxu0 %v1607
    %v1642 = vpop.f32.mrb[0].mxu0
    %v1643 = vadd.f32 0.0, %v1642
    %v1644 = vpop.f32.mrb[0].mxu0
    %v1645 = vadd.f32 0.0, %v1644
    %v1646 = vpop.f32.mrb[0].mxu0
    %v1647 = vadd.f32 0.0, %v1646
    %v1648 = vpop.f32.mrb[0].mxu0
    %v1649 = vadd.f32 0.0, %v1648
    %1650 = vdwg.mxu0
    %1651 = vmatprep.subr.bf16.mxu0 0
    %1652 = vmatpush1.bf16.msra.mxu0 %v652
    %1653 = vmatprep.subr.bf16.mxu0 0
    %1654 = vmatpush1.bf16.msra.mxu0 %v655
    %1655 = vmatprep.subr.bf16.mxu0 0
    %1656 = vmatpush1.bf16.msra.mxu0 %v658
    %1657 = vmatprep.subr.bf16.mxu0 0
    %1658 = vmatpush1.bf16.msra.mxu0 %v661
    %1659 = vmatprep.subr.bf16.mxu0 0
    %1660 = vmatpush1.bf16.msra.mxu0 %v664
    %1661 = vmatprep.subr.bf16.mxu0 0
    %1662 = vmatpush1.bf16.msra.mxu0 %v667
    %1663 = vmatprep.subr.bf16.mxu0 0
    %1664 = vmatpush1.bf16.msra.mxu0 %v670
    %1665 = vmatprep.subr.bf16.mxu0 0
    %1666 = vmatpush1.bf16.msra.mxu0 %v673
    %1667 = vmatprep.subr.bf16.mxu0 0
    %1668 = vmatpush1.bf16.msra.mxu0 0
    %1669 = vmatprep.subr.bf16.mxu0 0
    %1670 = vmatpush1.bf16.msra.mxu0 0
    %1671 = vmatprep.subr.bf16.mxu0 0
    %1672 = vmatpush1.bf16.msra.mxu0 0
    %1673 = vmatprep.subr.bf16.mxu0 0
    %1674 = vmatpush1.bf16.msra.mxu0 0
    %1675 = vmatprep.subr.bf16.mxu0 0
    %1676 = vmatpush1.bf16.msra.mxu0 0
    %1677 = vmatprep.subr.bf16.mxu0 0
    %1678 = vmatpush1.bf16.msra.mxu0 0
    %1679 = vmatprep.subr.bf16.mxu0 0
    %1680 = vmatpush1.bf16.msra.mxu0 0
    %1681 = vmatprep.subr.bf16.mxu0 0
    %1682 = vmatpush1.bf16.msra.mxu0 0
    %1683 = vmatprep.mubr.bf16.mxu0 0
    %1684 = vmatmul.mubr.bf16.gmra.mrb[0].mxu0 %v1607
    %v1685 = vpop.f32.mrb[0].mxu0
    %v1686 = vadd.f32 0.0, %v1685
    %v1687 = vpop.f32.mrb[0].mxu0
    %v1688 = vpop.f32.mrb[0].mxu0
    %v1689 = vadd.f32 0.0, %v1688
    %v1690 = vpop.f32.mrb[0].mxu0
    %1691 = vdwg.mxu0
    %v1692 = vadd.f32 %v1601, %v1643
    %v1693 = vadd.f32 %v1604, %v1647
    %v1694 = vxor.u32 %v1692, 2147483648
    %v1695 = vxor.u32 %v1693, 2147483648
    %v1696 = vmul.f32 %v1694, 1.442695
    %v1697 = vpow.pop %v1696
    %v1698 = vmul.f32 %v1695, 1.442695
    %v1699 = vpow.pop %v1698
    %v1700 = vadd.f32 %v1697, 1.0
    %v1701 = vadd.f32 %v1699, 1.0
    %v1702 = vrcp.pop %v1700
    %v1703 = vmul.f32 1.0, %v1702
    %v1704 = vrcp.pop %v1701
    %v1705 = vmul.f32 1.0, %v1704
    %v1706 = vadd.f32 %v1602, %v1645
    %v1707 = vadd.f32 %v1605, %v1649
    %v1708 = vxor.u32 %v1706, 2147483648
    %v1709 = vxor.u32 %v1707, 2147483648
    %v1710 = vmul.f32 %v1708, 1.442695
    %v1711 = vpow.pop %v1710
    %v1712 = vmul.f32 %v1709, 1.442695
    %v1713 = vpow.pop %v1712
    %v1714 = vadd.f32 %v1711, 1.0
    %v1715 = vadd.f32 %v1713, 1.0
    %v1716 = vrcp.pop %v1714
    %v1717 = vmul.f32 1.0, %v1716
    %v1718 = vrcp.pop %v1715
    %v1719 = vmul.f32 1.0, %v1718
    %v1720 = vadd.f32 %v1686, %v558
    %v1721 = vadd.f32 %v1689, %v558
    %v1722 = vmul.f32 %v1703, %v1720
    %v1723 = vmul.f32 %v1705, %v1721
    %v1724 = vadd.f32 %v1603, %v1722
    %v1725 = vadd.f32 %v1606, %v1723
    %v1726 = vtanh.pop %v1724
    %v1727 = vtanh.pop %v1725
    %v1728 = vsub.f32 %v1598, %v1726
    %v1729 = vsub.f32 %v1599, %v1727
    %v1730 = vmul.f32 %v1717, %v1728
    %v1731 = vmul.f32 %v1719, %v1729
    %v1732 = vadd.f32 %v1726, %v1730
    %v1733 = vadd.f32 %v1727, %v1731
    %v1734 = vpack.c.bf16 %v1733, %v1732
    %v1736 = vunpack.c.l.b16 %v1734
    %v1737 = vunpack.c.h.b16 %v1734
    %v1738 = vpack.c.b16 %v1736, %v1736
    %v1739 = vpack.c.b16 %v1737, %v1737
    %s1742 = scalar_lea.vmem [#allocation11], 48
    %1743 = vst [vmem:[%s1742] sm:$0xf] %v1738
    %1744 = vst [vmem:[%s1742 + $0x4] sm:$0xf] %v1739
    %s1745 = sadd.s32 %s560, 6
    %p1746 = scmp.lt.s32.totalorder %s1745, 9
    %s1747 = scalar_select %p1746, 1, 0
    %v1748 = vstv %s1747
    %vm1749 = vcmp.eq.s32.totalorder %v1748, 1
    %v1750 = vsel %vm1749, %v1732, %v1598
    %v1751 = vsel %vm1749, %v1733, %v1599
    %s1752 = scalar_lea.vmem [#allocation2], 336
    %v1753 = vld [vmem:[%s1752] sm:$0xff]
    %v1754 = vld [vmem:[%s1752 + $0x8] sm:$0xff]
    %v1755 = vld [vmem:[%s1752 + $0x10] sm:$0xff]
    %v1756 = vld [vmem:[%s1752 + $0x18] sm:$0xff]
    %v1757 = vld [vmem:[%s1752 + $0x20] sm:$0xff]
    %v1758 = vld [vmem:[%s1752 + $0x28] sm:$0xff]
    %v1759 = vpack.c.bf16 %v1751, %v1750
    %1760 = vmatprep.subr.bf16.mxu0 %v651
    %1761 = vmatpush1.bf16.msra.mxu0 %v650
    %1762 = vmatprep.subr.bf16.mxu0 %v654
    %1763 = vmatpush1.bf16.msra.mxu0 %v653
    %1764 = vmatprep.subr.bf16.mxu0 %v657
    %1765 = vmatpush1.bf16.msra.mxu0 %v656
    %1766 = vmatprep.subr.bf16.mxu0 %v660
    %1767 = vmatpush1.bf16.msra.mxu0 %v659
    %1768 = vmatprep.subr.bf16.mxu0 %v663
    %1769 = vmatpush1.bf16.msra.mxu0 %v662
    %1770 = vmatprep.subr.bf16.mxu0 %v666
    %1771 = vmatpush1.bf16.msra.mxu0 %v665
    %1772 = vmatprep.subr.bf16.mxu0 %v669
    %1773 = vmatpush1.bf16.msra.mxu0 %v668
    %1774 = vmatprep.subr.bf16.mxu0 %v672
    %1775 = vmatpush1.bf16.msra.mxu0 %v671
    %1776 = vmatprep.subr.bf16.mxu0 0
    %1777 = vmatpush1.bf16.msra.mxu0 0
    %1778 = vmatprep.subr.bf16.mxu0 0
    %1779 = vmatpush1.bf16.msra.mxu0 0
    %1780 = vmatprep.subr.bf16.mxu0 0
    %1781 = vmatpush1.bf16.msra.mxu0 0
    %1782 = vmatprep.subr.bf16.mxu0 0
    %1783 = vmatpush1.bf16.msra.mxu0 0
    %1784 = vmatprep.subr.bf16.mxu0 0
    %1785 = vmatpush1.bf16.msra.mxu0 0
    %1786 = vmatprep.subr.bf16.mxu0 0
    %1787 = vmatpush1.bf16.msra.mxu0 0
    %1788 = vmatprep.subr.bf16.mxu0 0
    %1789 = vmatpush1.bf16.msra.mxu0 0
    %1790 = vmatprep.subr.bf16.mxu0 0
    %1791 = vmatpush1.bf16.msra.mxu0 0
    %1792 = vmatprep.mubr.bf16.mxu0 0
    %1793 = vmatmul.mubr.bf16.gmra.mrb[0].mxu0 %v1759
    %v1794 = vpop.f32.mrb[0].mxu0
    %v1795 = vadd.f32 0.0, %v1794
    %v1796 = vpop.f32.mrb[0].mxu0
    %v1797 = vadd.f32 0.0, %v1796
    %v1798 = vpop.f32.mrb[0].mxu0
    %v1799 = vadd.f32 0.0, %v1798
    %v1800 = vpop.f32.mrb[0].mxu0
    %v1801 = vadd.f32 0.0, %v1800
    %1802 = vdwg.mxu0
    %1803 = vmatprep.subr.bf16.mxu0 0
    %1804 = vmatpush1.bf16.msra.mxu0 %v652
    %1805 = vmatprep.subr.bf16.mxu0 0
    %1806 = vmatpush1.bf16.msra.mxu0 %v655
    %1807 = vmatprep.subr.bf16.mxu0 0
    %1808 = vmatpush1.bf16.msra.mxu0 %v658
    %1809 = vmatprep.subr.bf16.mxu0 0
    %1810 = vmatpush1.bf16.msra.mxu0 %v661
    %1811 = vmatprep.subr.bf16.mxu0 0
    %1812 = vmatpush1.bf16.msra.mxu0 %v664
    %1813 = vmatprep.subr.bf16.mxu0 0
    %1814 = vmatpush1.bf16.msra.mxu0 %v667
    %1815 = vmatprep.subr.bf16.mxu0 0
    %1816 = vmatpush1.bf16.msra.mxu0 %v670
    %1817 = vmatprep.subr.bf16.mxu0 0
    %1818 = vmatpush1.bf16.msra.mxu0 %v673
    %1819 = vmatprep.subr.bf16.mxu0 0
    %1820 = vmatpush1.bf16.msra.mxu0 0
    %1821 = vmatprep.subr.bf16.mxu0 0
    %1822 = vmatpush1.bf16.msra.mxu0 0
    %1823 = vmatprep.subr.bf16.mxu0 0
    %1824 = vmatpush1.bf16.msra.mxu0 0
    %1825 = vmatprep.subr.bf16.mxu0 0
    %1826 = vmatpush1.bf16.msra.mxu0 0
    %1827 = vmatprep.subr.bf16.mxu0 0
    %1828 = vmatpush1.bf16.msra.mxu0 0
    %1829 = vmatprep.subr.bf16.mxu0 0
    %1830 = vmatpush1.bf16.msra.mxu0 0
    %1831 = vmatprep.subr.bf16.mxu0 0
    %1832 = vmatpush1.bf16.msra.mxu0 0
    %1833 = vmatprep.subr.bf16.mxu0 0
    %1834 = vmatpush1.bf16.msra.mxu0 0
    %1835 = vmatprep.mubr.bf16.mxu0 0
    %1836 = vmatmul.mubr.bf16.gmra.mrb[0].mxu0 %v1759
    %v1837 = vpop.f32.mrb[0].mxu0
    %v1838 = vadd.f32 0.0, %v1837
    %v1839 = vpop.f32.mrb[0].mxu0
    %v1840 = vpop.f32.mrb[0].mxu0
    %v1841 = vadd.f32 0.0, %v1840
    %v1842 = vpop.f32.mrb[0].mxu0
    %1843 = vdwg.mxu0
    %v1844 = vadd.f32 %v1753, %v1795
    %v1845 = vadd.f32 %v1756, %v1799
    %v1846 = vxor.u32 %v1844, 2147483648
    %v1847 = vxor.u32 %v1845, 2147483648
    %v1848 = vmul.f32 %v1846, 1.442695
    %v1849 = vpow.pop %v1848
    %v1850 = vmul.f32 %v1847, 1.442695
    %v1851 = vpow.pop %v1850
    %v1852 = vadd.f32 %v1849, 1.0
    %v1853 = vadd.f32 %v1851, 1.0
    %v1854 = vrcp.pop %v1852
    %v1855 = vmul.f32 1.0, %v1854
    %v1856 = vrcp.pop %v1853
    %v1857 = vmul.f32 1.0, %v1856
    %v1858 = vadd.f32 %v1754, %v1797
    %v1859 = vadd.f32 %v1757, %v1801
    %v1860 = vxor.u32 %v1858, 2147483648
    %v1861 = vxor.u32 %v1859, 2147483648
    %v1862 = vmul.f32 %v1860, 1.442695
    %v1863 = vpow.pop %v1862
    %v1864 = vmul.f32 %v1861, 1.442695
    %v1865 = vpow.pop %v1864
    %v1866 = vadd.f32 %v1863, 1.0
    %v1867 = vadd.f32 %v1865, 1.0
    %v1868 = vrcp.pop %v1866
    %v1869 = vmul.f32 1.0, %v1868
    %v1870 = vrcp.pop %v1867
    %v1871 = vmul.f32 1.0, %v1870
    %v1872 = vadd.f32 %v1838, %v558
    %v1873 = vadd.f32 %v1841, %v558
    %v1874 = vmul.f32 %v1855, %v1872
    %v1875 = vmul.f32 %v1857, %v1873
    %v1876 = vadd.f32 %v1755, %v1874
    %v1877 = vadd.f32 %v1758, %v1875
    %v1878 = vtanh.pop %v1876
    %v1879 = vtanh.pop %v1877
    %v1880 = vsub.f32 %v1750, %v1878
    %v1881 = vsub.f32 %v1751, %v1879
    %v1882 = vmul.f32 %v1869, %v1880
    %v1883 = vmul.f32 %v1871, %v1881
    %v1884 = vadd.f32 %v1878, %v1882
    %v1885 = vadd.f32 %v1879, %v1883
    %v1886 = vpack.c.bf16 %v1885, %v1884
    %v1888 = vunpack.c.l.b16 %v1886
    %v1889 = vunpack.c.h.b16 %v1886
    %v1890 = vpack.c.b16 %v1888, %v1888
    %v1891 = vpack.c.b16 %v1889, %v1889
    %s1894 = scalar_lea.vmem [#allocation11], 56
    %1895 = vst [vmem:[%s1894] sm:$0xf] %v1890
    %1896 = vst [vmem:[%s1894 + $0x4] sm:$0xf] %v1891
    %s1897 = sadd.s32 %s560, 7
    %p1898 = scmp.lt.s32.totalorder %s1897, 9
    %s1899 = scalar_select %p1898, 1, 0
    %v1900 = vstv %s1899
    %vm1901 = vcmp.eq.s32.totalorder %v1900, 1
    %v1902 = vsel %vm1901, %v1884, %v1750
    %v1903 = vsel %vm1901, %v1885, %v1751
    %s1904 = scalar_lea.vmem [#allocation2], 384
    %v1905 = vld [vmem:[%s1904] sm:$0xff]
    %v1906 = vld [vmem:[%s1904 + $0x8] sm:$0xff]
    %v1907 = vld [vmem:[%s1904 + $0x10] sm:$0xff]
    %v1908 = vld [vmem:[%s1904 + $0x18] sm:$0xff]
    %v1909 = vld [vmem:[%s1904 + $0x20] sm:$0xff]
    %v1910 = vld [vmem:[%s1904 + $0x28] sm:$0xff]
    %v1911 = vpack.c.bf16 %v1903, %v1902
    %1912 = vmatprep.subr.bf16.mxu0 %v651
    %1913 = vmatpush1.bf16.msra.mxu0 %v650
    %1914 = vmatprep.subr.bf16.mxu0 %v654
    %1915 = vmatpush1.bf16.msra.mxu0 %v653
    %1916 = vmatprep.subr.bf16.mxu0 %v657
    %1917 = vmatpush1.bf16.msra.mxu0 %v656
    %1918 = vmatprep.subr.bf16.mxu0 %v660
    %1919 = vmatpush1.bf16.msra.mxu0 %v659
    %1920 = vmatprep.subr.bf16.mxu0 %v663
    %1921 = vmatpush1.bf16.msra.mxu0 %v662
    %1922 = vmatprep.subr.bf16.mxu0 %v666
    %1923 = vmatpush1.bf16.msra.mxu0 %v665
    %1924 = vmatprep.subr.bf16.mxu0 %v669
    %1925 = vmatpush1.bf16.msra.mxu0 %v668
    %1926 = vmatprep.subr.bf16.mxu0 %v672
    %1927 = vmatpush1.bf16.msra.mxu0 %v671
    %1928 = vmatprep.subr.bf16.mxu0 0
    %1929 = vmatpush1.bf16.msra.mxu0 0
    %1930 = vmatprep.subr.bf16.mxu0 0
    %1931 = vmatpush1.bf16.msra.mxu0 0
    %1932 = vmatprep.subr.bf16.mxu0 0
    %1933 = vmatpush1.bf16.msra.mxu0 0
    %1934 = vmatprep.subr.bf16.mxu0 0
    %1935 = vmatpush1.bf16.msra.mxu0 0
    %1936 = vmatprep.subr.bf16.mxu0 0
    %1937 = vmatpush1.bf16.msra.mxu0 0
    %1938 = vmatprep.subr.bf16.mxu0 0
    %1939 = vmatpush1.bf16.msra.mxu0 0
    %1940 = vmatprep.subr.bf16.mxu0 0
    %1941 = vmatpush1.bf16.msra.mxu0 0
    %1942 = vmatprep.subr.bf16.mxu0 0
    %1943 = vmatpush1.bf16.msra.mxu0 0
    %1944 = vmatprep.mubr.bf16.mxu0 0
    %1945 = vmatmul.mubr.bf16.gmra.mrb[0].mxu0 %v1911
    %v1946 = vpop.f32.mrb[0].mxu0
    %v1947 = vadd.f32 0.0, %v1946
    %v1948 = vpop.f32.mrb[0].mxu0
    %v1949 = vadd.f32 0.0, %v1948
    %v1950 = vpop.f32.mrb[0].mxu0
    %v1951 = vadd.f32 0.0, %v1950
    %v1952 = vpop.f32.mrb[0].mxu0
    %v1953 = vadd.f32 0.0, %v1952
    %1954 = vdwg.mxu0
    %1955 = vmatprep.subr.bf16.mxu0 0
    %1956 = vmatpush1.bf16.msra.mxu0 %v652
    %1957 = vmatprep.subr.bf16.mxu0 0
    %1958 = vmatpush1.bf16.msra.mxu0 %v655
    %1959 = vmatprep.subr.bf16.mxu0 0
    %1960 = vmatpush1.bf16.msra.mxu0 %v658
    %1961 = vmatprep.subr.bf16.mxu0 0
    %1962 = vmatpush1.bf16.msra.mxu0 %v661
    %1963 = vmatprep.subr.bf16.mxu0 0
    %1964 = vmatpush1.bf16.msra.mxu0 %v664
    %1965 = vmatprep.subr.bf16.mxu0 0
    %1966 = vmatpush1.bf16.msra.mxu0 %v667
    %1967 = vmatprep.subr.bf16.mxu0 0
    %1968 = vmatpush1.bf16.msra.mxu0 %v670
    %1969 = vmatprep.subr.bf16.mxu0 0
    %1970 = vmatpush1.bf16.msra.mxu0 %v673
    %1971 = vmatprep.subr.bf16.mxu0 0
    %1972 = vmatpush1.bf16.msra.mxu0 0
    %1973 = vmatprep.subr.bf16.mxu0 0
    %1974 = vmatpush1.bf16.msra.mxu0 0
    %1975 = vmatprep.subr.bf16.mxu0 0
    %1976 = vmatpush1.bf16.msra.mxu0 0
    %1977 = vmatprep.subr.bf16.mxu0 0
    %1978 = vmatpush1.bf16.msra.mxu0 0
    %1979 = vmatprep.subr.bf16.mxu0 0
    %1980 = vmatpush1.bf16.msra.mxu0 0
    %1981 = vmatprep.subr.bf16.mxu0 0
    %1982 = vmatpush1.bf16.msra.mxu0 0
    %1983 = vmatprep.subr.bf16.mxu0 0
    %1984 = vmatpush1.bf16.msra.mxu0 0
    %1985 = vmatprep.subr.bf16.mxu0 0
    %1986 = vmatpush1.bf16.msra.mxu0 0
    %1987 = vmatprep.mubr.bf16.mxu0 0
    %1988 = vmatmul.mubr.bf16.gmra.mrb[0].mxu0 %v1911
    %v1989 = vpop.f32.mrb[0].mxu0
    %v1990 = vadd.f32 0.0, %v1989
    %v1991 = vpop.f32.mrb[0].mxu0
    %v1992 = vpop.f32.mrb[0].mxu0
    %v1993 = vadd.f32 0.0, %v1992
    %v1994 = vpop.f32.mrb[0].mxu0
    %1995 = vdwg.mxu0
    %v1996 = vadd.f32 %v1905, %v1947
    %v1997 = vadd.f32 %v1908, %v1951
    %v1998 = vxor.u32 %v1996, 2147483648
    %v1999 = vxor.u32 %v1997, 2147483648
    %v2000 = vmul.f32 %v1998, 1.442695
    %v2001 = vpow.pop %v2000
    %v2002 = vmul.f32 %v1999, 1.442695
    %v2003 = vpow.pop %v2002
    %v2004 = vadd.f32 %v2001, 1.0
    %v2005 = vadd.f32 %v2003, 1.0
    %v2006 = vrcp.pop %v2004
    %v2007 = vmul.f32 1.0, %v2006
    %v2008 = vrcp.pop %v2005
    %v2009 = vmul.f32 1.0, %v2008
    %v2010 = vadd.f32 %v1906, %v1949
    %v2011 = vadd.f32 %v1909, %v1953
    %v2012 = vxor.u32 %v2010, 2147483648
    %v2013 = vxor.u32 %v2011, 2147483648
    %v2014 = vmul.f32 %v2012, 1.442695
    %v2015 = vpow.pop %v2014
    %v2016 = vmul.f32 %v2013, 1.442695
    %v2017 = vpow.pop %v2016
    %v2018 = vadd.f32 %v2015, 1.0
    %v2019 = vadd.f32 %v2017, 1.0
    %v2020 = vrcp.pop %v2018
    %v2021 = vmul.f32 1.0, %v2020
    %v2022 = vrcp.pop %v2019
    %v2023 = vmul.f32 1.0, %v2022
    %v2024 = vadd.f32 %v1990, %v558
    %v2025 = vadd.f32 %v1993, %v558
    %v2026 = vmul.f32 %v2007, %v2024
    %v2027 = vmul.f32 %v2009, %v2025
    %v2028 = vadd.f32 %v1907, %v2026
    %v2029 = vadd.f32 %v1910, %v2027
    %v2030 = vtanh.pop %v2028
    %v2031 = vtanh.pop %v2029
    %v2032 = vsub.f32 %v1902, %v2030
    %v2033 = vsub.f32 %v1903, %v2031
    %v2034 = vmul.f32 %v2021, %v2032
    %v2035 = vmul.f32 %v2023, %v2033
    %v2036 = vadd.f32 %v2030, %v2034
    %v2037 = vadd.f32 %v2031, %v2035
    %v2038 = vpack.c.bf16 %v2037, %v2036
    %v2040 = vunpack.c.l.b16 %v2038
    %v2041 = vunpack.c.h.b16 %v2038
    %v2042 = vpack.c.b16 %v2040, %v2040
    %v2043 = vpack.c.b16 %v2041, %v2041
    %s2046 = scalar_lea.vmem [#allocation11], 64
    %2047 = vst [vmem:[%s2046] sm:$0xf] %v2042
    %2048 = vst [vmem:[%s2046 + $0x4] sm:$0xf] %v2043
    %s2049 = sadd.s32 %s560, 8
    %p2050 = scmp.lt.s32.totalorder %s2049, 9
    %s2051 = scalar_select %p2050, 1, 0
    %v2052 = vstv %s2051
    %vm2053 = vcmp.eq.s32.totalorder %v2052, 1
    %v2054 = vsel %vm2053, %v2036, %v1902
    %v2055 = vsel %vm2053, %v2037, %v1903
    %2056 = vst [vmem:[#allocation12] sm:$0xff] %v2054
    %2057 = vst [vmem:[#allocation12 + $0x8] sm:$0xff] %v2055
    // Predicated region
    $region46: #{tpu_custom_call.1} parent=1 // pred_check
      _
    $region47: #{tpu_custom_call.1} parent=1 // pred_check_branch
      %2059 = sbr.rel (0) target = $region49
    $region48: #{tpu_custom_call.1} parent=1 // pred_region
      %s2061 = ssub.s32 1152, 1152
      %2062 = vsyncadd [#allocation5], %s2061
      %s2063 = sshll.u32 [#allocation11], 4
      %s2064 = int_to_ptr.vmem [resolvable:$true] %s2063
      %2069 = dma.vmem_to_hbm [thread:$0]  %s2064, 1152, %s6, [#allocation5], 64, 64, 4
    $region49: #{tpu_custom_call.1} parent=1 // pred_fallthru
      _
    // Predicated region
    $region50: #{tpu_custom_call.1} parent=1 // pred_check
      _
    $region51: #{tpu_custom_call.1} parent=1 // pred_check_branch
      %2071 = sbr.rel (0) target = $region53
    $region52: #{tpu_custom_call.1} parent=1 // pred_region
      %s2073 = ssub.s32 256, 256
      %2074 = vsyncadd [#allocation13], %s2073
      %s2075 = sshll.u32 [#allocation12], 4
      %s2076 = int_to_ptr.vmem [resolvable:$true] %s2075
      %2081 = dma.vmem_to_hbm [thread:$0]  %s2076, 256, %s7, [#allocation13], 128, 128, 8
    $region53: #{tpu_custom_call.1} parent=1 // pred_fallthru
      _
    // Predicated region
    $region54: #{tpu_custom_call.1} parent=1 // pred_check
      _
    $region55: #{tpu_custom_call.1} parent=1 // pred_check_branch
      %2083 = sbr.rel (0) target = $region57
    $region56: #{tpu_custom_call.1} parent=1 // pred_region
      %2084 = dma.done [#allocation5], 1152
    $region57: #{tpu_custom_call.1} parent=1 // pred_fallthru
      _
    // Predicated region
    $region58: #{tpu_custom_call.1} parent=1 // pred_check
      _
    $region59: #{tpu_custom_call.1} parent=1 // pred_check_branch
      %2086 = sbr.rel (0) target = $region61
    $region60: #{tpu_custom_call.1} parent=1 // pred_region
      %2087 = dma.done [#allocation13], 256
    $region61: #{tpu_custom_call.1} parent=1 // pred_fallthru
      _
    %2088 = vsyncpa [#allocation4], 1
    %2089 = vsyncpa [#allocation7], 1
    %2090 = vsyncpa [#allocation10], 1
    %2091 = vsyncpa [#allocation5], 1
    %2092 = vsyncpa [#allocation13], 1

</llo_original>
